<compile_context>
chip_gen: v6e
topology: v6e:2x2x1
jax: 0.10.0
libtpu: 0.0.40
codegen_flags: <defaults>
</compile_context>

<pallas_src>
import math
import functools

import jax
import jax.numpy as jnp
from jax import lax
from jax.experimental import pallas as pl
from jax.experimental.pallas import tpu as pltpu

_BN_EPS = 1e-5


def _rec_tile(x_tile, x_all, rel):
    """relu((x_tile @ rel) @ x_all.T) without materializing a transpose."""
    ip = jnp.dot(x_tile, rel, preferred_element_type=jnp.float32)          # (tm, D)
    rec = lax.dot_general(
        ip, x_all,
        dimension_numbers=(((1,), (1,)), ((), ())),                        # contract D
        preferred_element_type=jnp.float32)                                # (tm, N)
    return jnp.maximum(rec, 0.0)


def _stats_kernel(x_tile_ref, x_all_ref, rel_ref, w_ref, b_ref,
                  scale_ref, shift_ref, sum_sc, sq_sc):
    """Phase 1: accumulate per-column stats; finalize fused BN+Linear coeffs."""
    i = pl.program_id(0)

    @pl.when(i == 0)
    def _init():
        sum_sc[...] = jnp.zeros_like(sum_sc)
        sq_sc[...] = jnp.zeros_like(sq_sc)

    rec = _rec_tile(x_tile_ref[...], x_all_ref[...], rel_ref[...])         # (tm, N)
    sum_sc[...] += jnp.sum(rec, axis=0, keepdims=True)
    sq_sc[...] += jnp.sum(rec * rec, axis=0, keepdims=True)

    @pl.when(i == pl.num_programs(0) - 1)
    def _finalize():
        n_rows = jnp.float32(x_all_ref.shape[0])                           # global N
        mean = sum_sc[...] / n_rows                                        # (1, N)
        var = jnp.maximum(sq_sc[...] / n_rows - mean * mean, 0.0)          # biased var
        inv_std = lax.rsqrt(var + _BN_EPS)
        scale = w_ref[...] * inv_std                                       # (1, N)
        scale_ref[...] = scale
        shift_ref[...] = b_ref[...] - jnp.sum(scale * mean, axis=1, keepdims=True)


def _decode_kernel(x_tile_ref, x_all_ref, rel_ref, scale_ref, shift_ref, out_ref):
    """Phase 2: recompute rec row tile, fused BN+Linear as weighted lane reduce."""
    rec = _rec_tile(x_tile_ref[...], x_all_ref[...], rel_ref[...])         # (tm, N)
    out = jnp.sum(rec * scale_ref[...], axis=-1, keepdims=True) + shift_ref[...]
    out_ref[...] = out.astype(out_ref.dtype)


def _pick_row_tile(n, target=128):
    if n % target == 0:
        return target
    for t in (256, 128, 64, 32, 16, 8):
        if t <= n and n % t == 0:
            return t
    return n


@functools.partial(jax.jit, static_argnames=("block_rows",))
def bilinear_decoder(inputs, relation, lin_w, lin_b, *, block_rows=None):
    """inputs: (N, D), relation: (D, D), lin_w: (1, N), lin_b: (1,) -> (N, 1)."""
    n, d = inputs.shape
    assert relation.shape == (d, d)
    assert lin_w.shape == (1, n)
    assert lin_b.shape == (1,)

    tm = block_rows if block_rows is not None else _pick_row_tile(n)
    num_tiles = n // tm
    b2 = lin_b.reshape(1, 1).astype(jnp.float32)

    vmem_limit = 32 * 1024 * 1024
    matmul_flops = 2 * n * d * d + 2 * n * n * d
    io_bytes = 4 * (2 * n * d + d * d + 3 * n + 2)

    # -------- Phase 1: column statistics -> fused (scale, shift) ------------
    scale, shift = pl.pallas_call(
        _stats_kernel,
        out_shape=(jax.ShapeDtypeStruct((1, n), jnp.float32),
                   jax.ShapeDtypeStruct((1, 1), jnp.float32)),
        grid=(num_tiles,),
        in_specs=[
            pl.BlockSpec((tm, d), lambda i: (i, 0)),   # x row tile
            pl.BlockSpec((n, d), lambda i: (0, 0)),    # x full (column side)
            pl.BlockSpec((d, d), lambda i: (0, 0)),    # relation
            pl.BlockSpec((1, n), lambda i: (0, 0)),    # linear weight
            pl.BlockSpec((1, 1), lambda i: (0, 0)),    # linear bias
        ],
        out_specs=(pl.BlockSpec((1, n), lambda i: (0, 0)),
                   pl.BlockSpec((1, 1), lambda i: (0, 0))),
        scratch_shapes=[pltpu.VMEM((1, n), jnp.float32),   # column sums
                        pltpu.VMEM((1, n), jnp.float32)],  # column sum of squares
        compiler_params=pltpu.CompilerParams(
            dimension_semantics=("arbitrary",),            # stats accumulator
            vmem_limit_bytes=vmem_limit),
        cost_estimate=pl.CostEstimate(
            flops=matmul_flops + 4 * n * n,
            transcendentals=n,
            bytes_accessed=io_bytes),
    )(inputs, inputs, relation, lin_w.astype(jnp.float32), b2)

    # -------- Phase 2: fused BN + Linear over recomputed rec row tiles ------
    out = pl.pallas_call(
        _decode_kernel,
        out_shape=jax.ShapeDtypeStruct((n, 1), jnp.float32),
        grid=(num_tiles,),
        in_specs=[
            pl.BlockSpec((tm, d), lambda i: (i, 0)),
            pl.BlockSpec((n, d), lambda i: (0, 0)),
            pl.BlockSpec((d, d), lambda i: (0, 0)),
            pl.BlockSpec((1, n), lambda i: (0, 0)),    # fused BN*W scale
            pl.BlockSpec((1, 1), lambda i: (0, 0)),    # fused shift (+ bias)
        ],
        out_specs=pl.BlockSpec((tm, 1), lambda i: (i, 0)),
        compiler_params=pltpu.CompilerParams(
            dimension_semantics=("parallel",),             # rows independent
            vmem_limit_bytes=vmem_limit),
        cost_estimate=pl.CostEstimate(
            flops=matmul_flops + 3 * n * n,
            transcendentals=0,
            bytes_accessed=io_bytes),
    )(inputs, inputs, relation, scale, shift)

    return out


def reference(inputs, relation, lin_w, lin_b):
    ip = inputs @ relation
    rec = jnp.maximum(ip @ inputs.T, 0.0)
    mean = jnp.mean(rec, axis=0, keepdims=True)
    var = jnp.mean((rec - mean) ** 2, axis=0, keepdims=True)
    rec_bn = (rec - mean) / jnp.sqrt(var + _BN_EPS)
    return rec_bn @ lin_w.T + lin_b


if __name__ == "__main__":
    # Small, deterministic setup with TPU-friendly shapes (multiples of 128/8).
    N, D = 256, 128
    key = jax.random.PRNGKey(0)
    k_x, k_rel, k_w, k_b = jax.random.split(key, 4)

    inputs = jax.random.normal(k_x, (N, D), dtype=jnp.float32)

    # relation: xavier_uniform_ over (D, D) -> U(-sqrt(6/(D+D)), +sqrt(6/(D+D)))
    xav = math.sqrt(6.0 / (D + D))
    relation = jax.random.uniform(k_rel, (D, D), jnp.float32, -xav, xav)

    # nn.Linear(N, 1): weight (1, N), bias (1,), U(-1/sqrt(N), +1/sqrt(N))
    lim = 1.0 / math.sqrt(N)
    lin_w = jax.random.uniform(k_w, (1, N), jnp.float32, -lim, lim)
    lin_b = jax.random.uniform(k_b, (1,), jnp.float32, -lim, lim)

    out = bilinear_decoder(inputs, relation, lin_w, lin_b)
    out = jax.block_until_ready(out)

    ref = reference(inputs, relation, lin_w, lin_b)
    assert out.shape == (N, 1)
    assert jnp.allclose(out, ref, atol=2e-3, rtol=2e-3), (
        f"max abs diff {jnp.max(jnp.abs(out - ref))}")

    print("KERNEL_OK")
</pallas_src>

<mosaic_0001>
module attributes {stable_mosaic.version = 11 : i64} {
  func.func @_stats_kernel(%arg0: i32, %arg1: memref<128x128xf32, #tpu.memory_space<vmem>>, %arg2: memref<256x128xf32, #tpu.memory_space<vmem>>, %arg3: memref<128x128xf32, #tpu.memory_space<vmem>>, %arg4: memref<1x256xf32, #tpu.memory_space<vmem>>, %arg5: memref<1x1xf32, #tpu.memory_space<vmem>>, %arg6: memref<1x256xf32, #tpu.memory_space<vmem>>, %arg7: memref<1x1xf32, #tpu.memory_space<vmem>>, %arg8: memref<1x256xf32, #tpu.memory_space<vmem>>, %arg9: memref<1x256xf32, #tpu.memory_space<vmem>>) attributes {dimension_semantics = [#tpu.dimension_semantics<arbitrary>], iteration_bounds = array<i64: 2>, scalar_prefetch = 0 : i64, scratch_operands = 2 : i64, tpu.core_type = #tpu.core_type<tc>, window_params = [{transform_indices = @transform_0, window_bounds = array<i64: 128, 128>}, {pipeline_mode = #tpu.pipeline_mode<synchronous>, transform_indices = @transform_1, window_bounds = array<i64: 256, 128>}, {pipeline_mode = #tpu.pipeline_mode<synchronous>, transform_indices = @transform_2, window_bounds = array<i64: 128, 128>}, {pipeline_mode = #tpu.pipeline_mode<synchronous>, transform_indices = @transform_3, window_bounds = array<i64: 1, 256>}, {pipeline_mode = #tpu.pipeline_mode<synchronous>, transform_indices = @transform_4, window_bounds = array<i64: 1, 1>}, {pipeline_mode = #tpu.pipeline_mode<synchronous>, transform_indices = @transform_5, window_bounds = array<i64: 1, 256>}, {pipeline_mode = #tpu.pipeline_mode<synchronous>, transform_indices = @transform_6, window_bounds = array<i64: 1, 1>}]} {
    %c0_i32 = arith.constant 0 : i32
    %0 = arith.cmpi eq, %arg0, %c0_i32 : i32
    %1 = arith.extui %0 : i1 to i32
    %c0_i32_0 = arith.constant 0 : i32
    %2 = arith.cmpi ne, %1, %c0_i32_0 : i32
    scf.if %2 {
      %cst_19 = arith.constant 0.000000e+00 : f32
      %24 = vector.broadcast %cst_19 : f32 to vector<1x256xf32>
      %c0_20 = arith.constant 0 : index
      %c0_21 = arith.constant 0 : index
      %25 = vector.load %arg8[%c0_20, %c0_21] : memref<1x256xf32, #tpu.memory_space<vmem>>, vector<1x256xf32>
      tpu.vector_store %arg8[%c0_20, %c0_21], %24 {strides = array<i32>} : memref<1x256xf32, #tpu.memory_space<vmem>>, vector<1x256xf32>,
      %cst_22 = arith.constant 0.000000e+00 : f32
      %26 = vector.broadcast %cst_22 : f32 to vector<1x256xf32>
      %c0_23 = arith.constant 0 : index
      %c0_24 = arith.constant 0 : index
      %27 = vector.load %arg9[%c0_23, %c0_24] : memref<1x256xf32, #tpu.memory_space<vmem>>, vector<1x256xf32>
      tpu.vector_store %arg9[%c0_23, %c0_24], %26 {strides = array<i32>} : memref<1x256xf32, #tpu.memory_space<vmem>>, vector<1x256xf32>,
    } else {
    }
    %c0 = arith.constant 0 : index
    %c0_1 = arith.constant 0 : index
    %3 = vector.load %arg1[%c0, %c0_1] : memref<128x128xf32, #tpu.memory_space<vmem>>, vector<128x128xf32>
    %c0_2 = arith.constant 0 : index
    %c0_3 = arith.constant 0 : index
    %4 = vector.load %arg2[%c0_2, %c0_3] : memref<256x128xf32, #tpu.memory_space<vmem>>, vector<256x128xf32>
    %c0_4 = arith.constant 0 : index
    %c0_5 = arith.constant 0 : index
    %5 = vector.load %arg3[%c0_4, %c0_5] : memref<128x128xf32, #tpu.memory_space<vmem>>, vector<128x128xf32>
    %cst = arith.constant dense<0.000000e+00> : vector<128x128xf32>
    %6 = tpu.matmul %3, %5, %cst {dimension_numbers = #tpu.dot_dimension_numbers<[1], [0], [0], [1], [0, 0, 1, 1], [], []>} : vector<128x128xf32>, vector<128x128xf32>, vector<128x128xf32> -> vector<128x128xf32>
    %cst_6 = arith.constant dense<0.000000e+00> : vector<128x256xf32>
    %7 = tpu.matmul %6, %4, %cst_6 {dimension_numbers = #tpu.dot_dimension_numbers<[1], [1], [0], [0], [0, 0, 1, 0], [], []>} : vector<128x128xf32>, vector<256x128xf32>, vector<128x256xf32> -> vector<128x256xf32>
    %cst_7 = arith.constant 0.000000e+00 : f32
    %8 = vector.broadcast %cst_7 : f32 to vector<128x256xf32>
    %9 = arith.maximumf %7, %8 : vector<128x256xf32>
    %c0_8 = arith.constant 0 : index
    %c0_9 = arith.constant 0 : index
    %10 = vector.load %arg8[%c0_8, %c0_9] : memref<1x256xf32, #tpu.memory_space<vmem>>, vector<1x256xf32>
    %cst_10 = arith.constant dense<0.000000e+00> : vector<256xf32>
    %11 = vector.multi_reduction <add>, %9, %cst_10 [0] : vector<128x256xf32> to vector<256xf32>
    %12 = vector.shape_cast %11 : vector<256xf32> to vector<1x256xf32>
    %13 = arith.addf %10, %12 : vector<1x256xf32>
    %c0_11 = arith.constant 0 : index
    %c0_12 = arith.constant 0 : index
    %14 = vector.load %arg8[%c0_11, %c0_12] : memref<1x256xf32, #tpu.memory_space<vmem>>, vector<1x256xf32>
    tpu.vector_store %arg8[%c0_11, %c0_12], %13 {strides = array<i32>} : memref<1x256xf32, #tpu.memory_space<vmem>>, vector<1x256xf32>,
    %c0_13 = arith.constant 0 : index
    %c0_14 = arith.constant 0 : index
    %15 = vector.load %arg9[%c0_13, %c0_14] : memref<1x256xf32, #tpu.memory_space<vmem>>, vector<1x256xf32>
    %16 = arith.mulf %9, %9 : vector<128x256xf32>
    %cst_15 = arith.constant dense<0.000000e+00> : vector<256xf32>
    %17 = vector.multi_reduction <add>, %16, %cst_15 [0] : vector<128x256xf32> to vector<256xf32>
    %18 = vector.shape_cast %17 : vector<256xf32> to vector<1x256xf32>
    %19 = arith.addf %15, %18 : vector<1x256xf32>
    %c0_16 = arith.constant 0 : index
    %c0_17 = arith.constant 0 : index
    %20 = vector.load %arg9[%c0_16, %c0_17] : memref<1x256xf32, #tpu.memory_space<vmem>>, vector<1x256xf32>
    tpu.vector_store %arg9[%c0_16, %c0_17], %19 {strides = array<i32>} : memref<1x256xf32, #tpu.memory_space<vmem>>, vector<1x256xf32>,
    %c1_i32 = arith.constant 1 : i32
    %21 = arith.cmpi eq, %arg0, %c1_i32 : i32
    %22 = arith.extui %21 : i1 to i32
    %c0_i32_18 = arith.constant 0 : i32
    %23 = arith.cmpi ne, %22, %c0_i32_18 : i32
    scf.if %23 {
      %c0_19 = arith.constant 0 : index
      %c0_20 = arith.constant 0 : index
      %24 = vector.load %arg8[%c0_19, %c0_20] : memref<1x256xf32, #tpu.memory_space<vmem>>, vector<1x256xf32>
      %cst_21 = arith.constant 2.560000e+02 : f32
      %25 = vector.broadcast %cst_21 : f32 to vector<1x256xf32>
      %26 = arith.divf %24, %25 : vector<1x256xf32>
      %c0_22 = arith.constant 0 : index
      %c0_23 = arith.constant 0 : index
      %27 = vector.load %arg9[%c0_22, %c0_23] : memref<1x256xf32, #tpu.memory_space<vmem>>, vector<1x256xf32>
      %cst_24 = arith.constant 2.560000e+02 : f32
      %28 = vector.broadcast %cst_24 : f32 to vector<1x256xf32>
      %29 = arith.divf %27, %28 : vector<1x256xf32>
      %30 = arith.mulf %26, %26 : vector<1x256xf32>
      %31 = arith.subf %29, %30 : vector<1x256xf32>
      %cst_25 = arith.constant 0.000000e+00 : f32
      %32 = vector.broadcast %cst_25 : f32 to vector<1x256xf32>
      %33 = arith.maximumf %31, %32 : vector<1x256xf32>
      %cst_26 = arith.constant 9.99999974E-6 : f32
      %34 = vector.broadcast %cst_26 : f32 to vector<1x256xf32>
      %35 = arith.addf %33, %34 : vector<1x256xf32>
      %36 = math.rsqrt %35 : vector<1x256xf32>
      %c0_27 = arith.constant 0 : index
      %c0_28 = arith.constant 0 : index
      %37 = vector.load %arg4[%c0_27, %c0_28] : memref<1x256xf32, #tpu.memory_space<vmem>>, vector<1x256xf32>
      %38 = arith.mulf %37, %36 : vector<1x256xf32>
      %c0_29 = arith.constant 0 : index
      %c0_30 = arith.constant 0 : index
      %39 = vector.load %arg6[%c0_29, %c0_30] : memref<1x256xf32, #tpu.memory_space<vmem>>, vector<1x256xf32>
      tpu.vector_store %arg6[%c0_29, %c0_30], %38 {strides = array<i32>} : memref<1x256xf32, #tpu.memory_space<vmem>>, vector<1x256xf32>,
      %c0_31 = arith.constant 0 : index
      %c0_32 = arith.constant 0 : index
      %40 = vector.load %arg5[%c0_31, %c0_32] : memref<1x1xf32, #tpu.memory_space<vmem>>, vector<1x1xf32>
      %41 = arith.mulf %38, %26 : vector<1x256xf32>
      %cst_33 = arith.constant dense<0.000000e+00> : vector<1xf32>
      %42 = vector.multi_reduction <add>, %41, %cst_33 [1] : vector<1x256xf32> to vector<1xf32>
      %43 = vector.shape_cast %42 : vector<1xf32> to vector<1x1xf32>
      %44 = arith.subf %40, %43 : vector<1x1xf32>
      %c0_34 = arith.constant 0 : index
      %c0_35 = arith.constant 0 : index
      %45 = vector.load %arg7[%c0_34, %c0_35] : memref<1x1xf32, #tpu.memory_space<vmem>>, vector<1x1xf32>
      tpu.vector_store %arg7[%c0_34, %c0_35], %44 {strides = array<i32>} : memref<1x1xf32, #tpu.memory_space<vmem>>, vector<1x1xf32>,
    } else {
    }
    return
  }
  func.func @transform_0(%arg0: i32) -> (i32, i32) {
    %c0_i32 = arith.constant 0 : i32
    %c0_i32_0 = arith.constant 0 : i32
    return %arg0, %c0_i32 : i32, i32
  }
  func.func @transform_1(%arg0: i32) -> (i32, i32) {
    %c0_i32 = arith.constant 0 : i32
    %c0_i32_0 = arith.constant 0 : i32
    %c0_i32_1 = arith.constant 0 : i32
    return %c0_i32, %c0_i32_0 : i32, i32
  }
  func.func @transform_2(%arg0: i32) -> (i32, i32) {
    %c0_i32 = arith.constant 0 : i32
    %c0_i32_0 = arith.constant 0 : i32
    %c0_i32_1 = arith.constant 0 : i32
    return %c0_i32, %c0_i32_0 : i32, i32
  }
  func.func @transform_3(%arg0: i32) -> (i32, i32) {
    %c0_i32 = arith.constant 0 : i32
    %c0_i32_0 = arith.constant 0 : i32
    %c0_i32_1 = arith.constant 0 : i32
    return %c0_i32, %c0_i32_0 : i32, i32
  }
  func.func @transform_4(%arg0: i32) -> (i32, i32) {
    %c0_i32 = arith.constant 0 : i32
    %c0_i32_0 = arith.constant 0 : i32
    %c0_i32_1 = arith.constant 0 : i32
    return %c0_i32, %c0_i32_0 : i32, i32
  }
  func.func @transform_5(%arg0: i32) -> (i32, i32) {
    %c0_i32 = arith.constant 0 : i32
    %c0_i32_0 = arith.constant 0 : i32
    %c0_i32_1 = arith.constant 0 : i32
    return %c0_i32, %c0_i32_0 : i32, i32
  }
  func.func @transform_6(%arg0: i32) -> (i32, i32) {
    %c0_i32 = arith.constant 0 : i32
    %c0_i32_0 = arith.constant 0 : i32
    %c0_i32_1 = arith.constant 0 : i32
    return %c0_i32, %c0_i32_0 : i32, i32
  }
}

module attributes {stable_mosaic.version = 11 : i64} {
  func.func @_decode_kernel(%arg0: i32, %arg1: memref<128x128xf32, #tpu.memory_space<vmem>>, %arg2: memref<256x128xf32, #tpu.memory_space<vmem>>, %arg3: memref<128x128xf32, #tpu.memory_space<vmem>>, %arg4: memref<1x256xf32, #tpu.memory_space<vmem>>, %arg5: memref<1x1xf32, #tpu.memory_space<vmem>>, %arg6: memref<128x1xf32, #tpu.memory_space<vmem>>) attributes {dimension_semantics = [#tpu.dimension_semantics<parallel>], iteration_bounds = array<i64: 2>, scalar_prefetch = 0 : i64, scratch_operands = 0 : i64, tpu.core_type = #tpu.core_type<tc>, window_params = [{transform_indices = @transform_0, window_bounds = array<i64: 128, 128>}, {pipeline_mode = #tpu.pipeline_mode<synchronous>, transform_indices = @transform_1, window_bounds = array<i64: 256, 128>}, {pipeline_mode = #tpu.pipeline_mode<synchronous>, transform_indices = @transform_2, window_bounds = array<i64: 128, 128>}, {pipeline_mode = #tpu.pipeline_mode<synchronous>, transform_indices = @transform_3, window_bounds = array<i64: 1, 256>}, {pipeline_mode = #tpu.pipeline_mode<synchronous>, transform_indices = @transform_4, window_bounds = array<i64: 1, 1>}, {transform_indices = @transform_5, window_bounds = array<i64: 128, 1>}]} {
    %c0 = arith.constant 0 : index
    %c0_0 = arith.constant 0 : index
    %0 = vector.load %arg1[%c0, %c0_0] : memref<128x128xf32, #tpu.memory_space<vmem>>, vector<128x128xf32>
    %c0_1 = arith.constant 0 : index
    %c0_2 = arith.constant 0 : index
    %1 = vector.load %arg2[%c0_1, %c0_2] : memref<256x128xf32, #tpu.memory_space<vmem>>, vector<256x128xf32>
    %c0_3 = arith.constant 0 : index
    %c0_4 = arith.constant 0 : index
    %2 = vector.load %arg3[%c0_3, %c0_4] : memref<128x128xf32, #tpu.memory_space<vmem>>, vector<128x128xf32>
    %cst = arith.constant dense<0.000000e+00> : vector<128x128xf32>
    %3 = tpu.matmul %0, %2, %cst {dimension_numbers = #tpu.dot_dimension_numbers<[1], [0], [0], [1], [0, 0, 1, 1], [], []>} : vector<128x128xf32>, vector<128x128xf32>, vector<128x128xf32> -> vector<128x128xf32>
    %cst_5 = arith.constant dense<0.000000e+00> : vector<128x256xf32>
    %4 = tpu.matmul %3, %1, %cst_5 {dimension_numbers = #tpu.dot_dimension_numbers<[1], [1], [0], [0], [0, 0, 1, 0], [], []>} : vector<128x128xf32>, vector<256x128xf32>, vector<128x256xf32> -> vector<128x256xf32>
    %cst_6 = arith.constant 0.000000e+00 : f32
    %5 = vector.broadcast %cst_6 : f32 to vector<128x256xf32>
    %6 = arith.maximumf %4, %5 : vector<128x256xf32>
    %c0_7 = arith.constant 0 : index
    %c0_8 = arith.constant 0 : index
    %7 = vector.load %arg4[%c0_7, %c0_8] : memref<1x256xf32, #tpu.memory_space<vmem>>, vector<1x256xf32>
    %8 = vector.broadcast %7 : vector<1x256xf32> to vector<128x256xf32>
    %9 = arith.mulf %6, %8 : vector<128x256xf32>
    %cst_9 = arith.constant dense<0.000000e+00> : vector<128xf32>
    %10 = vector.multi_reduction <add>, %9, %cst_9 [1] : vector<128x256xf32> to vector<128xf32>
    %11 = vector.shape_cast %10 : vector<128xf32> to vector<128x1xf32>
    %c0_10 = arith.constant 0 : index
    %c0_11 = arith.constant 0 : index
    %12 = vector.load %arg5[%c0_10, %c0_11] : memref<1x1xf32, #tpu.memory_space<vmem>>, vector<1x1xf32>
    %13 = vector.broadcast %12 : vector<1x1xf32> to vector<128x1xf32>
    %14 = arith.addf %11, %13 : vector<128x1xf32>
    %c0_12 = arith.constant 0 : index
    %c0_13 = arith.constant 0 : index
    %15 = vector.load %arg6[%c0_12, %c0_13] : memref<128x1xf32, #tpu.memory_space<vmem>>, vector<128x1xf32>
    tpu.vector_store %arg6[%c0_12, %c0_13], %14 {strides = array<i32>} : memref<128x1xf32, #tpu.memory_space<vmem>>, vector<128x1xf32>,
    return
  }
  func.func @transform_0(%arg0: i32) -> (i32, i32) {
    %c0_i32 = arith.constant 0 : i32
    %c0_i32_0 = arith.constant 0 : i32
    return %arg0, %c0_i32 : i32, i32
  }
  func.func @transform_1(%arg0: i32) -> (i32, i32) {
    %c0_i32 = arith.constant 0 : i32
    %c0_i32_0 = arith.constant 0 : i32
    %c0_i32_1 = arith.constant 0 : i32
    return %c0_i32, %c0_i32_0 : i32, i32
  }
  func.func @transform_2(%arg0: i32) -> (i32, i32) {
    %c0_i32 = arith.constant 0 : i32
    %c0_i32_0 = arith.constant 0 : i32
    %c0_i32_1 = arith.constant 0 : i32
    return %c0_i32, %c0_i32_0 : i32, i32
  }
  func.func @transform_3(%arg0: i32) -> (i32, i32) {
    %c0_i32 = arith.constant 0 : i32
    %c0_i32_0 = arith.constant 0 : i32
    %c0_i32_1 = arith.constant 0 : i32
    return %c0_i32, %c0_i32_0 : i32, i32
  }
  func.func @transform_4(%arg0: i32) -> (i32, i32) {
    %c0_i32 = arith.constant 0 : i32
    %c0_i32_0 = arith.constant 0 : i32
    %c0_i32_1 = arith.constant 0 : i32
    return %c0_i32, %c0_i32_0 : i32, i32
  }
  func.func @transform_5(%arg0: i32) -> (i32, i32) {
    %c0_i32 = arith.constant 0 : i32
    %c0_i32_0 = arith.constant 0 : i32
    return %arg0, %c0_i32 : i32, i32
  }
}

</mosaic_0001>

<llo_original>
// kernel: bilinear_decoder.2
$region0: #{bilinear_decoder.2}
  #allocation0 [shape = 'u32[]', space=smem, size = 0x4, offset = 0x4, fixed_abs, tag = 'smem constant byte address 0x4 - core index']
  #allocation1 [shape = 'u32[144,128]{1,0:T(1,128)}', space=vmem, size = 0x12000, scoped, tag = 'internal scratch']
  #allocation2 [shape = 'f32[1,256]{1,0:T(1,128)}', space=vmem, size = 0x400, scoped, tag = 'scratch operand']
  #allocation3 [shape = 'f32[1,256]{1,0:T(1,128)}', space=vmem, size = 0x400, scoped, tag = 'scratch operand']
  #allocation4 [shape = 'f32[1,1]{1,0:T(1,128)S(1)}', space=vmem, size = 0x200, scoped, tag = 'scoped memory for bilinear_decoder.2']
  %s0 = inlined_call_operand.hbm [shape: f32[256,128], index: 0, kind: input, shape index: {}, may-alias: {0,1}]
  %s1 = inlined_call_operand.hbm [shape: f32[256,128], index: 1, kind: input, shape index: {}, may-alias: {0,1}]
  %s2 = inlined_call_operand.hbm [shape: f32[128,128], index: 2, kind: input, shape index: {}]
  %s3 = inlined_call_operand.vmem [shape: f32[1,256], index: 3, kind: input, shape index: {}]
  %s4 = inlined_call_operand.<no memory space> [shape: f32[1,1], index: 4, kind: input, shape index: {}]
  %s5 = inlined_call_operand.vmem [shape: f32[1,256], index: 5, kind: output, shape index: {0}]
  %s6 = inlined_call_operand.hbm [shape: f32[1,1], index: 6, kind: output, shape index: {1}]
  %7 = xla_tuple %s5, %s6
  %s8 = sld [smem:[#allocation0]]
  $region81: #{bilinear_decoder.2} parent=0
    _
  %s10 = ssub.s32 1, %s8
  %s11 = scalar_select 0, %s10, %s8
  %v12 = vstv %s4
  %13 = vst [vmem:[#allocation4] sm:$0x1] %v12
  $region1: #{bilinear_decoder.2} parent=0
    #allocation5 [shape = 'u8[131072]{0}', space=vmem, size = 0x20000, scoped, tag = 'input window, operand 0']
    #allocation6 [shape = 's32[2]{0}', space=sflag, size = 0x8, scoped, tag = 'scoped memory for bilinear_decoder.2']
    #allocation7 [shape = 's32[2]{0}', space=sflag, size = 0x8, scoped, tag = 'scoped memory for bilinear_decoder.2']
    #allocation8 [shape = 'u8[131072]{0}', space=vmem, size = 0x20000, scoped, tag = 'input window, operand 1, single buffered']
    #allocation9 [shape = 's32[1]{0}', space=sflag, size = 0x4, scoped, tag = 'scoped memory for bilinear_decoder.2']
    #allocation10 [shape = 'u8[65536]{0}', space=vmem, size = 0x10000, scoped, tag = 'input window, operand 2, single buffered']
    #allocation11 [shape = 'u8[512]{0}', space=vmem, size = 0x400, scoped, tag = 'output window, operand 1, single buffered']
    %14 = vsyncpa [#allocation6], 0
    %s15 = scalar_lea.sflag [#allocation6], 1
    %16 = vsyncpa %s15, 0
    %17 = vsyncpa [#allocation9], 0
    %18 = vsyncpa [#allocation7], 0
    loop: start=0, step=1, limit=4
    $region2: #{bilinear_decoder.2} parent=1 // loop_pre_header
      _
    $region3: #{bilinear_decoder.2} parent=1 // loop_header
      %s20 = sphi 0, %s24
      %p21 = scmp.ge.s32.totalorder %s20, 4
      %s30 = sphi 0, %s32
      %s33 = sphi 0, %s30
      %s34 = sphi 0, %s33
      %s50 = sphi 0, %s34
      %s54 = sphi 0, %s54
      %s56 = sphi 0, %s54
      %s57 = sphi 0, %s56
      %s71 = sphi 0, %s57
      %s75 = sphi 0, %s75
      %s77 = sphi 0, %s75
      %s78 = sphi 0, %s77
      %s92 = sphi 0, %s78
      %s96 = sphi 0, %s96
      %s98 = sphi 0, %s96
      %s99 = sphi 0, %s98
      %s113 = sphi 0, %s99
      %s117 = sphi 0, %s117
      %s119 = sphi 0, %s117
      %s120 = sphi 0, %s119
      %s134 = sphi 0, %s120
      %s138 = sphi 0, %s138
      %s140 = sphi 0, %s138
      %s141 = sphi 0, %s140
      %s155 = sphi 0, %s141
      %s159 = sphi 0, %s159
      %s161 = sphi 0, %s159
      %s162 = sphi 0, %s161
      %s176 = sphi 0, %s162
    $region4: #{bilinear_decoder.2} parent=1 // loop_header_branch
      %23 = sbr.rel (%p21) target = $region8
    $region5: #{bilinear_decoder.2} parent=1 // loop_body
      %s25 = ssub.s32 %s20, 1
      %s26 = ssub.s32 %s20, 2
      %s27 = sadd.s32 %s20, 1
      %s28 = ssub.s32 %s20, %s27
      %p29 = scmp.eq.s32.totalorder %s28, 0
      %s31 = sadd.s32 %s30, 1
      %s32 = scalar_select %p29, %s30, %s31
      %p35 = pneg %p29
      %p36 = scmp.eq.s32.totalorder %s20, 1
      %p37 = por %p35, %p36
      %p38 = scmp.ne.s32.totalorder %s30, %s33
      %p39 = scmp.eq.s32.totalorder %s20, 0
      %p40 = por %p38, %p39
      %p41 = scmp.ne.s32.totalorder %s30, %s33
      %p42 = scmp.eq.s32.totalorder %s25, 1
      %p43 = por %p41, %p42
      %p44 = scmp.ne.s32.totalorder %s33, %s34
      %p45 = scmp.eq.s32.totalorder %s25, 0
      %p46 = por %p44, %p45
      %p47 = scmp.ne.s32.totalorder %s33, %s34
      %p48 = scmp.eq.s32.totalorder %s26, 1
      %p49 = por %p47, %p48
      %p51 = scmp.ne.s32.totalorder %s34, %s50
      %p52 = scmp.eq.s32.totalorder %s26, 0
      %p53 = por %p51, %p52
      %s55 = sadd.s32 %s54, 1
      %p58 = scmp.eq.s32.totalorder %s20, 1
      %p59 = scmp.ne.s32.totalorder %s54, %s56
      %p60 = scmp.eq.s32.totalorder %s20, 0
      %p61 = por %p59, %p60
      %p62 = scmp.ne.s32.totalorder %s54, %s56
      %p63 = scmp.eq.s32.totalorder %s25, 1
      %p64 = por %p62, %p63
      %p65 = scmp.ne.s32.totalorder %s56, %s57
      %p66 = scmp.eq.s32.totalorder %s25, 0
      %p67 = por %p65, %p66
      %p68 = scmp.ne.s32.totalorder %s56, %s57
      %p69 = scmp.eq.s32.totalorder %s26, 1
      %p70 = por %p68, %p69
      %p72 = scmp.ne.s32.totalorder %s57, %s71
      %p73 = scmp.eq.s32.totalorder %s26, 0
      %p74 = por %p72, %p73
      %s76 = sadd.s32 %s75, 1
      %p79 = scmp.eq.s32.totalorder %s20, 1
      %p80 = scmp.ne.s32.totalorder %s75, %s77
      %p81 = scmp.eq.s32.totalorder %s20, 0
      %p82 = por %p80, %p81
      %p83 = scmp.ne.s32.totalorder %s75, %s77
      %p84 = scmp.eq.s32.totalorder %s25, 1
      %p85 = por %p83, %p84
      %p86 = scmp.ne.s32.totalorder %s77, %s78
      %p87 = scmp.eq.s32.totalorder %s25, 0
      %p88 = por %p86, %p87
      %p89 = scmp.ne.s32.totalorder %s77, %s78
      %p90 = scmp.eq.s32.totalorder %s26, 1
      %p91 = por %p89, %p90
      %p93 = scmp.ne.s32.totalorder %s78, %s92
      %p94 = scmp.eq.s32.totalorder %s26, 0
      %p95 = por %p93, %p94
      %s97 = sadd.s32 %s96, 1
      %p100 = scmp.eq.s32.totalorder %s20, 1
      %p101 = scmp.ne.s32.totalorder %s96, %s98
      %p102 = scmp.eq.s32.totalorder %s20, 0
      %p103 = por %p101, %p102
      %p104 = scmp.ne.s32.totalorder %s96, %s98
      %p105 = scmp.eq.s32.totalorder %s25, 1
      %p106 = por %p104, %p105
      %p107 = scmp.ne.s32.totalorder %s98, %s99
      %p108 = scmp.eq.s32.totalorder %s25, 0
      %p109 = por %p107, %p108
      %p110 = scmp.ne.s32.totalorder %s98, %s99
      %p111 = scmp.eq.s32.totalorder %s26, 1
      %p112 = por %p110, %p111
      %p114 = scmp.ne.s32.totalorder %s99, %s113
      %p115 = scmp.eq.s32.totalorder %s26, 0
      %p116 = por %p114, %p115
      %s118 = sadd.s32 %s117, 1
      %p121 = scmp.eq.s32.totalorder %s20, 1
      %p122 = scmp.ne.s32.totalorder %s117, %s119
      %p123 = scmp.eq.s32.totalorder %s20, 0
      %p124 = por %p122, %p123
      %p125 = scmp.ne.s32.totalorder %s117, %s119
      %p126 = scmp.eq.s32.totalorder %s25, 1
      %p127 = por %p125, %p126
      %p128 = scmp.ne.s32.totalorder %s119, %s120
      %p129 = scmp.eq.s32.totalorder %s25, 0
      %p130 = por %p128, %p129
      %p131 = scmp.ne.s32.totalorder %s119, %s120
      %p132 = scmp.eq.s32.totalorder %s26, 1
      %p133 = por %p131, %p132
      %p135 = scmp.ne.s32.totalorder %s120, %s134
      %p136 = scmp.eq.s32.totalorder %s26, 0
      %p137 = por %p135, %p136
      %s139 = sadd.s32 %s138, 1
      %p142 = scmp.eq.s32.totalorder %s20, 1
      %p143 = scmp.ne.s32.totalorder %s138, %s140
      %p144 = scmp.eq.s32.totalorder %s20, 0
      %p145 = por %p143, %p144
      %p146 = scmp.ne.s32.totalorder %s138, %s140
      %p147 = scmp.eq.s32.totalorder %s25, 1
      %p148 = por %p146, %p147
      %p149 = scmp.ne.s32.totalorder %s140, %s141
      %p150 = scmp.eq.s32.totalorder %s25, 0
      %p151 = por %p149, %p150
      %p152 = scmp.ne.s32.totalorder %s140, %s141
      %p153 = scmp.eq.s32.totalorder %s26, 1
      %p154 = por %p152, %p153
      %p156 = scmp.ne.s32.totalorder %s141, %s155
      %p157 = scmp.eq.s32.totalorder %s26, 0
      %p158 = por %p156, %p157
      %s160 = sadd.s32 %s159, 1
      %p163 = scmp.eq.s32.totalorder %s20, 1
      %p164 = scmp.ne.s32.totalorder %s159, %s161
      %p165 = scmp.eq.s32.totalorder %s20, 0
      %p166 = por %p164, %p165
      %p167 = scmp.ne.s32.totalorder %s159, %s161
      %p168 = scmp.eq.s32.totalorder %s25, 1
      %p169 = por %p167, %p168
      %p170 = scmp.ne.s32.totalorder %s161, %s162
      %p171 = scmp.eq.s32.totalorder %s25, 0
      %p172 = por %p170, %p171
      %p173 = scmp.ne.s32.totalorder %s161, %s162
      %p174 = scmp.eq.s32.totalorder %s26, 1
      %p175 = por %p173, %p174
      %p177 = scmp.ne.s32.totalorder %s162, %s176
      %p178 = scmp.eq.s32.totalorder %s26, 0
      %p179 = por %p177, %p178
      %p180 = scmp.le.s32.totalorder 1, %s20
      %p181 = scmp.lt.s32.totalorder %s20, 3
      %p182 = pnand %p180, %p181
      %p183 = pneg %p182
      // Predicated region
      $region9: #{bilinear_decoder.2} parent=5 // pred_check
        _
      $region10: #{bilinear_decoder.2} parent=5 // pred_check_branch
        %185 = sbr.rel (%p182) target = $region12
      $region11: #{bilinear_decoder.2} parent=5 // pred_region
        %s186 = ssub.s32 %s20, 1
        // Predicated region
        $region13: #{bilinear_decoder.2} parent=11 // pred_check
          %p187 = pneg %p67
        $region14: #{bilinear_decoder.2} parent=11 // pred_check_branch
          %189 = sbr.rel (%p187) target = $region16
        $region15: #{bilinear_decoder.2} parent=11 // pred_region
          %s191 = ssub.s32 4096, 4096
          %192 = vsyncadd [#allocation9], %s191
          %s193 = sshll.u32 [#allocation8], 4
          %s194 = int_to_ptr.vmem [resolvable:$true] %s193
          %199 = dma.hbm_to_vmem [thread:$0]  %s1, 4096, %s194, [#allocation9], 128, 128, 8
        $region16: #{bilinear_decoder.2} parent=11 // pred_fallthru
          _
        // Predicated region
        $region17: #{bilinear_decoder.2} parent=11 // pred_check
          %p200 = pneg %p88
        $region18: #{bilinear_decoder.2} parent=11 // pred_check_branch
          %202 = sbr.rel (%p200) target = $region20
        $region19: #{bilinear_decoder.2} parent=11 // pred_region
          %s204 = ssub.s32 2048, 2048
          %205 = vsyncadd [#allocation9], %s204
          %s206 = sshll.u32 [#allocation10], 4
          %s207 = int_to_ptr.vmem [resolvable:$true] %s206
          %212 = dma.hbm_to_vmem [thread:$0]  %s2, 2048, %s207, [#allocation9], 128, 128, 8
        $region20: #{bilinear_decoder.2} parent=11 // pred_fallthru
          _
        // Predicated region
        $region21: #{bilinear_decoder.2} parent=11 // pred_check
          %p213 = pneg %p109
        $region22: #{bilinear_decoder.2} parent=11 // pred_check_branch
          %215 = sbr.rel (%p213) target = $region24
        $region23: #{bilinear_decoder.2} parent=11 // pred_region
          _
        $region24: #{bilinear_decoder.2} parent=11 // pred_fallthru
          _
        // Predicated region
        $region25: #{bilinear_decoder.2} parent=11 // pred_check
          %p216 = pneg %p130
        $region26: #{bilinear_decoder.2} parent=11 // pred_check_branch
          %218 = sbr.rel (%p216) target = $region28
        $region27: #{bilinear_decoder.2} parent=11 // pred_region
          _
        $region28: #{bilinear_decoder.2} parent=11 // pred_fallthru
          _
      $region12: #{bilinear_decoder.2} parent=5 // pred_fallthru
        _
      %p219 = scmp.lt.s32.totalorder %s20, 2
      // Predicated region
      $region29: #{bilinear_decoder.2} parent=5 // pred_check
        %p220 = pneg %p219
      $region30: #{bilinear_decoder.2} parent=5 // pred_check_branch
        %222 = sbr.rel (%p220) target = $region32
      $region31: #{bilinear_decoder.2} parent=5 // pred_region
        // Predicated region
        $region33: #{bilinear_decoder.2} parent=31 // pred_check
          %p223 = pneg %p40
        $region34: #{bilinear_decoder.2} parent=31 // pred_check_branch
          %225 = sbr.rel (%p223) target = $region36
        $region35: #{bilinear_decoder.2} parent=31 // pred_region
          %s226 = sand.u32 %s30, 1
          %s227 = scalar_lea.sflag [#allocation6], %s226
          %s228 = sand.u32 %s30, 1
          %s229 = smul.addr %s228, 128
          %s230 = scalar_lea.vmem [#allocation5], %s229
          %s231 = smul.u32 16, %s20
          %s233 = ssub.s32 2048, 2048
          %234 = vsyncadd %s227, %s233
          %s235 = smul.addr %s231, 128
          %s236 = scalar_lea.hbm %s0, %s235
          %s237 = sshll.u32 %s230, 4
          %s238 = int_to_ptr.vmem [resolvable:$true] %s237
          %243 = dma.hbm_to_vmem [thread:$0]  %s236, 2048, %s238, %s227, 128, 128, 8
        $region36: #{bilinear_decoder.2} parent=31 // pred_fallthru
          _
      $region32: #{bilinear_decoder.2} parent=5 // pred_fallthru
        _
      %p244 = scmp.le.s32.totalorder 1, %s20
      %p245 = scmp.lt.s32.totalorder %s20, 3
      %p246 = pnand %p244, %p245
      %p247 = pneg %p246
      // Predicated region
      $region37: #{bilinear_decoder.2} parent=5 // pred_check
        _
      $region38: #{bilinear_decoder.2} parent=5 // pred_check_branch
        %249 = sbr.rel (%p246) target = $region40
      $region39: #{bilinear_decoder.2} parent=5 // pred_region
        %s250 = ssub.s32 %s20, 1
        %s251 = sand.u32 %s33, 1
        %s252 = scalar_lea.sflag [#allocation6], %s251
        %s253 = sand.u32 %s33, 1
        %s254 = smul.addr %s253, 128
        %s255 = scalar_lea.vmem [#allocation5], %s254
        // Predicated region
        $region41: #{bilinear_decoder.2} parent=39 // pred_check
          %p256 = pneg %p46
        $region42: #{bilinear_decoder.2} parent=39 // pred_check_branch
          %258 = sbr.rel (%p256) target = $region44
        $region43: #{bilinear_decoder.2} parent=39 // pred_region
          %259 = dma.done %s252, 2048
        $region44: #{bilinear_decoder.2} parent=39 // pred_fallthru
          _
        // Predicated region
        $region45: #{bilinear_decoder.2} parent=39 // pred_check
          %p260 = pneg %p67
        $region46: #{bilinear_decoder.2} parent=39 // pred_check_branch
          %262 = sbr.rel (%p260) target = $region48
        $region47: #{bilinear_decoder.2} parent=39 // pred_region
          %263 = dma.done [#allocation9], 4096
        $region48: #{bilinear_decoder.2} parent=39 // pred_fallthru
          _
        // Predicated region
        $region49: #{bilinear_decoder.2} parent=39 // pred_check
          %p264 = pneg %p88
        $region50: #{bilinear_decoder.2} parent=39 // pred_check_branch
          %266 = sbr.rel (%p264) target = $region52
        $region51: #{bilinear_decoder.2} parent=39 // pred_region
          %267 = dma.done [#allocation9], 2048
        $region52: #{bilinear_decoder.2} parent=39 // pred_fallthru
          _
        %s268 = sand.u32 %s33, 1
        %s269 = scalar_lea.sflag [#allocation6], %s268
        %s270 = sand.u32 %s33, 1
        %s271 = smul.addr %s270, 128
        %s272 = scalar_lea.vmem [#allocation5], %s271
        %p273 = pneg %p46
        %p274 = pneg %p43
        %p275 = pneg %p67
        %p276 = pneg %p64
        %p277 = pneg %p88
        %p278 = pneg %p85
        %p279 = pneg %p109
        %p280 = pneg %p106
        %p281 = pneg %p130
        %p282 = pneg %p127
        %p283 = pneg %p151
        %p284 = pneg %p148
        %p285 = pneg %p172
        %p286 = pneg %p169
        %s287 = smul.u32 16, %s25
        %p288 = scmp.eq.s32.totalorder %s25, 0
        // Predicated region
        $region53: #{bilinear_decoder.2} parent=39 // pred_check
          %p289 = pneg %p288
        $region54: #{bilinear_decoder.2} parent=39 // pred_check_branch
          %291 = sbr.rel (%p289) target = $region56
        $region55: #{bilinear_decoder.2} parent=39 // pred_region
          %v292 = vlaneseq
          %vm293 = vcmp.ge.s32.totalorder %v292, 0
          %vm294 = vcmp.lt.s32.totalorder %v292, 256
          %vm295 = vmand %vm293, %vm294
          %296 = vst.msk [vmem:[#allocation2] sm:$0x3] %vm295, 0.0
          %297 = vst.msk [vmem:[#allocation3] sm:$0x3] %vm295, 0.0
        $region56: #{bilinear_decoder.2} parent=39 // pred_fallthru
          _
        %v298 = vld [vmem:[%s255] sm:$0xff]
        %v299 = vld [vmem:[%s255 + $0x8] sm:$0xff]
        %v300 = vld [vmem:[%s255 + $0x10] sm:$0xff]
        %v301 = vld [vmem:[%s255 + $0x18] sm:$0xff]
        %v302 = vld [vmem:[%s255 + $0x20] sm:$0xff]
        %v303 = vld [vmem:[%s255 + $0x28] sm:$0xff]
        %v304 = vld [vmem:[%s255 + $0x30] sm:$0xff]
        %v305 = vld [vmem:[%s255 + $0x38] sm:$0xff]
        %v306 = vld [vmem:[%s255 + $0x40] sm:$0xff]
        %v307 = vld [vmem:[%s255 + $0x48] sm:$0xff]
        %v308 = vld [vmem:[%s255 + $0x50] sm:$0xff]
        %v309 = vld [vmem:[%s255 + $0x58] sm:$0xff]
        %v310 = vld [vmem:[%s255 + $0x60] sm:$0xff]
        %v311 = vld [vmem:[%s255 + $0x68] sm:$0xff]
        %v312 = vld [vmem:[%s255 + $0x70] sm:$0xff]
        %v313 = vld [vmem:[%s255 + $0x78] sm:$0xff]
        %v314 = vld [vmem:[#allocation8] sm:$0xff]
        %v315 = vld [vmem:[#allocation8 + $0x8] sm:$0xff]
        %v316 = vld [vmem:[#allocation8 + $0x10] sm:$0xff]
        %v317 = vld [vmem:[#allocation8 + $0x18] sm:$0xff]
        %v318 = vld [vmem:[#allocation8 + $0x20] sm:$0xff]
        %v319 = vld [vmem:[#allocation8 + $0x28] sm:$0xff]
        %v320 = vld [vmem:[#allocation8 + $0x30] sm:$0xff]
        %v321 = vld [vmem:[#allocation8 + $0x38] sm:$0xff]
        %v322 = vld [vmem:[#allocation8 + $0x40] sm:$0xff]
        %v323 = vld [vmem:[#allocation8 + $0x48] sm:$0xff]
        %v324 = vld [vmem:[#allocation8 + $0x50] sm:$0xff]
        %v325 = vld [vmem:[#allocation8 + $0x58] sm:$0xff]
        %v326 = vld [vmem:[#allocation8 + $0x60] sm:$0xff]
        %v327 = vld [vmem:[#allocation8 + $0x68] sm:$0xff]
        %v328 = vld [vmem:[#allocation8 + $0x70] sm:$0xff]
        %v329 = vld [vmem:[#allocation8 + $0x78] sm:$0xff]
        %v330 = vld [vmem:[#allocation8 + $0x80] sm:$0xff]
        %v331 = vld [vmem:[#allocation8 + $0x88] sm:$0xff]
        %v332 = vld [vmem:[#allocation8 + $0x90] sm:$0xff]
        %v333 = vld [vmem:[#allocation8 + $0x98] sm:$0xff]
        %v334 = vld [vmem:[#allocation8 + $0xa0] sm:$0xff]
        %v335 = vld [vmem:[#allocation8 + $0xa8] sm:$0xff]
        %v336 = vld [vmem:[#allocation8 + $0xb0] sm:$0xff]
        %v337 = vld [vmem:[#allocation8 + $0xb8] sm:$0xff]
        %v338 = vld [vmem:[#allocation8 + $0xc0] sm:$0xff]
        %v339 = vld [vmem:[#allocation8 + $0xc8] sm:$0xff]
        %v340 = vld [vmem:[#allocation8 + $0xd0] sm:$0xff]
        %v341 = vld [vmem:[#allocation8 + $0xd8] sm:$0xff]
        %v342 = vld [vmem:[#allocation8 + $0xe0] sm:$0xff]
        %v343 = vld [vmem:[#allocation8 + $0xe8] sm:$0xff]
        %v344 = vld [vmem:[#allocation8 + $0xf0] sm:$0xff]
        %v345 = vld [vmem:[#allocation8 + $0xf8] sm:$0xff]
        %v346 = vld [vmem:[#allocation10] sm:$0xff]
        %v347 = vld [vmem:[#allocation10 + $0x8] sm:$0xff]
        %v348 = vld [vmem:[#allocation10 + $0x10] sm:$0xff]
        %v349 = vld [vmem:[#allocation10 + $0x18] sm:$0xff]
        %v350 = vld [vmem:[#allocation10 + $0x20] sm:$0xff]
        %v351 = vld [vmem:[#allocation10 + $0x28] sm:$0xff]
        %v352 = vld [vmem:[#allocation10 + $0x30] sm:$0xff]
        %v353 = vld [vmem:[#allocation10 + $0x38] sm:$0xff]
        %v354 = vld [vmem:[#allocation10 + $0x40] sm:$0xff]
        %v355 = vld [vmem:[#allocation10 + $0x48] sm:$0xff]
        %v356 = vld [vmem:[#allocation10 + $0x50] sm:$0xff]
        %v357 = vld [vmem:[#allocation10 + $0x58] sm:$0xff]
        %v358 = vld [vmem:[#allocation10 + $0x60] sm:$0xff]
        %v359 = vld [vmem:[#allocation10 + $0x68] sm:$0xff]
        %v360 = vld [vmem:[#allocation10 + $0x70] sm:$0xff]
        %v361 = vld [vmem:[#allocation10 + $0x78] sm:$0xff]
        %362 = vmatprep.subr.mxu0 0.0
        %363 = vmatpush1.msra.mxu0 %v361
        %364 = vmatprep.subr.mxu0 0.0
        %365 = vmatpush1.msra.mxu0 %v360
        %366 = vmatprep.subr.mxu0 0.0
        %367 = vmatpush1.msra.mxu0 %v359
        %368 = vmatprep.subr.mxu0 0.0
        %369 = vmatpush1.msra.mxu0 %v358
        %370 = vmatprep.subr.mxu0 0.0
        %371 = vmatpush1.msra.mxu0 %v357
        %372 = vmatprep.subr.mxu0 0.0
        %373 = vmatpush1.msra.mxu0 %v356
        %374 = vmatprep.subr.mxu0 0.0
        %375 = vmatpush1.msra.mxu0 %v355
        %376 = vmatprep.subr.mxu0 0.0
        %377 = vmatpush1.msra.mxu0 %v354
        %378 = vmatprep.subr.mxu0 0.0
        %379 = vmatpush1.msra.mxu0 %v353
        %380 = vmatprep.subr.mxu0 0.0
        %381 = vmatpush1.msra.mxu0 %v352
        %382 = vmatprep.subr.mxu0 0.0
        %383 = vmatpush1.msra.mxu0 %v351
        %384 = vmatprep.subr.mxu0 0.0
        %385 = vmatpush1.msra.mxu0 %v350
        %386 = vmatprep.subr.mxu0 0.0
        %387 = vmatpush1.msra.mxu0 %v349
        %388 = vmatprep.subr.mxu0 0.0
        %389 = vmatpush1.msra.mxu0 %v348
        %390 = vmatprep.subr.mxu0 0.0
        %391 = vmatpush1.msra.mxu0 %v347
        %392 = vmatprep.subr.mxu0 0.0
        %393 = vmatpush1.msra.mxu0 %v346
        %394 = vmatprep.subr.mxu0 0.0
        %395 = vmatpush2.msra.mxu0 0.0
        %396 = vmatprep.subr.mxu0 0.0
        %397 = vmatpush2.msra.mxu0 0.0
        %398 = vmatprep.subr.mxu0 0.0
        %399 = vmatpush2.msra.mxu0 0.0
        %400 = vmatprep.subr.mxu0 0.0
        %401 = vmatpush2.msra.mxu0 0.0
        %402 = vmatprep.subr.mxu0 0.0
        %403 = vmatpush2.msra.mxu0 0.0
        %404 = vmatprep.subr.mxu0 0.0
        %405 = vmatpush2.msra.mxu0 0.0
        %406 = vmatprep.subr.mxu0 0.0
        %407 = vmatpush2.msra.mxu0 0.0
        %408 = vmatprep.subr.mxu0 0.0
        %409 = vmatpush2.msra.mxu0 0.0
        %410 = vmatprep.subr.mxu0 0.0
        %411 = vmatpush2.msra.mxu0 0.0
        %412 = vmatprep.subr.mxu0 0.0
        %413 = vmatpush2.msra.mxu0 0.0
        %414 = vmatprep.subr.mxu0 0.0
        %415 = vmatpush2.msra.mxu0 0.0
        %416 = vmatprep.subr.mxu0 0.0
        %417 = vmatpush2.msra.mxu0 0.0
        %418 = vmatprep.subr.mxu0 0.0
        %419 = vmatpush2.msra.mxu0 0.0
        %420 = vmatprep.subr.mxu0 0.0
        %421 = vmatpush2.msra.mxu0 0.0
        %422 = vmatprep.subr.mxu0 0.0
        %423 = vmatpush2.msra.mxu0 0.0
        %424 = vmatprep.subr.mxu0 0.0
        %425 = vmatpush2.msra.mxu0 0.0
        %426 = vmatprep.mubr.f32.mxu0 0.0
        %427 = vmatmul.mubr.f32.gmra.mxu0 %v298
        %v428 = vpop.f32.mrf.mxu0
        %v429 = vadd.f32 0.0, %v428
        %v430 = vpop.f32.mrf.mxu0
        %431 = vmatprep.mubr.f32.mxu0 0.0
        %432 = vmatmul.mubr.f32.gmra.mxu0 %v299
        %v433 = vpop.f32.mrf.mxu0
        %v434 = vadd.f32 0.0, %v433
        %v435 = vpop.f32.mrf.mxu0
        %436 = vmatprep.mubr.f32.mxu0 0.0
        %437 = vmatmul.mubr.f32.gmra.mxu0 %v300
        %v438 = vpop.f32.mrf.mxu0
        %v439 = vadd.f32 0.0, %v438
        %v440 = vpop.f32.mrf.mxu0
        %441 = vmatprep.mubr.f32.mxu0 0.0
        %442 = vmatmul.mubr.f32.gmra.mxu0 %v301
        %v443 = vpop.f32.mrf.mxu0
        %v444 = vadd.f32 0.0, %v443
        %v445 = vpop.f32.mrf.mxu0
        %446 = vmatprep.mubr.f32.mxu0 0.0
        %447 = vmatmul.mubr.f32.gmra.mxu0 %v302
        %v448 = vpop.f32.mrf.mxu0
        %v449 = vadd.f32 0.0, %v448
        %v450 = vpop.f32.mrf.mxu0
        %451 = vmatprep.mubr.f32.mxu0 0.0
        %452 = vmatmul.mubr.f32.gmra.mxu0 %v303
        %v453 = vpop.f32.mrf.mxu0
        %v454 = vadd.f32 0.0, %v453
        %v455 = vpop.f32.mrf.mxu0
        %456 = vmatprep.mubr.f32.mxu0 0.0
        %457 = vmatmul.mubr.f32.gmra.mxu0 %v304
        %v458 = vpop.f32.mrf.mxu0
        %v459 = vadd.f32 0.0, %v458
        %v460 = vpop.f32.mrf.mxu0
        %461 = vmatprep.mubr.f32.mxu0 0.0
        %462 = vmatmul.mubr.f32.gmra.mxu0 %v305
        %v463 = vpop.f32.mrf.mxu0
        %v464 = vadd.f32 0.0, %v463
        %v465 = vpop.f32.mrf.mxu0
        %466 = vmatprep.mubr.f32.mxu0 0.0
        %467 = vmatmul.mubr.f32.gmra.mxu0 %v306
        %v468 = vpop.f32.mrf.mxu0
        %v469 = vadd.f32 0.0, %v468
        %v470 = vpop.f32.mrf.mxu0
        %471 = vmatprep.mubr.f32.mxu0 0.0
        %472 = vmatmul.mubr.f32.gmra.mxu0 %v307
        %v473 = vpop.f32.mrf.mxu0
        %v474 = vadd.f32 0.0, %v473
        %v475 = vpop.f32.mrf.mxu0
        %476 = vmatprep.mubr.f32.mxu0 0.0
        %477 = vmatmul.mubr.f32.gmra.mxu0 %v308
        %v478 = vpop.f32.mrf.mxu0
        %v479 = vadd.f32 0.0, %v478
        %v480 = vpop.f32.mrf.mxu0
        %481 = vmatprep.mubr.f32.mxu0 0.0
        %482 = vmatmul.mubr.f32.gmra.mxu0 %v309
        %v483 = vpop.f32.mrf.mxu0
        %v484 = vadd.f32 0.0, %v483
        %v485 = vpop.f32.mrf.mxu0
        %486 = vmatprep.mubr.f32.mxu0 0.0
        %487 = vmatmul.mubr.f32.gmra.mxu0 %v310
        %v488 = vpop.f32.mrf.mxu0
        %v489 = vadd.f32 0.0, %v488
        %v490 = vpop.f32.mrf.mxu0
        %491 = vmatprep.mubr.f32.mxu0 0.0
        %492 = vmatmul.mubr.f32.gmra.mxu0 %v311
        %v493 = vpop.f32.mrf.mxu0
        %v494 = vadd.f32 0.0, %v493
        %v495 = vpop.f32.mrf.mxu0
        %496 = vmatprep.mubr.f32.mxu0 0.0
        %497 = vmatmul.mubr.f32.gmra.mxu0 %v312
        %v498 = vpop.f32.mrf.mxu0
        %v499 = vadd.f32 0.0, %v498
        %v500 = vpop.f32.mrf.mxu0
        %501 = vmatprep.mubr.f32.mxu0 0.0
        %502 = vmatmul.mubr.f32.gmra.mxu0 %v313
        %v503 = vpop.f32.mrf.mxu0
        %v504 = vadd.f32 0.0, %v503
        %v505 = vpop.f32.mrf.mxu0
        %506 = vdwg.mxu0
        %507 = vmatprep.subr.mxu0 0.0
        %508 = vmatpush1.xpose.msra.mxu0 %v329
        %509 = vmatprep.subr.mxu0 0.0
        %510 = vmatpush1.xpose.msra.mxu0 %v328
        %511 = vmatprep.subr.mxu0 0.0
        %512 = vmatpush1.xpose.msra.mxu0 %v327
        %513 = vmatprep.subr.mxu0 0.0
        %514 = vmatpush1.xpose.msra.mxu0 %v326
        %515 = vmatprep.subr.mxu0 0.0
        %516 = vmatpush1.xpose.msra.mxu0 %v325
        %517 = vmatprep.subr.mxu0 0.0
        %518 = vmatpush1.xpose.msra.mxu0 %v324
        %519 = vmatprep.subr.mxu0 0.0
        %520 = vmatpush1.xpose.msra.mxu0 %v323
        %521 = vmatprep.subr.mxu0 0.0
        %522 = vmatpush1.xpose.msra.mxu0 %v322
        %523 = vmatprep.subr.mxu0 0.0
        %524 = vmatpush1.xpose.msra.mxu0 %v321
        %525 = vmatprep.subr.mxu0 0.0
        %526 = vmatpush1.xpose.msra.mxu0 %v320
        %527 = vmatprep.subr.mxu0 0.0
        %528 = vmatpush1.xpose.msra.mxu0 %v319
        %529 = vmatprep.subr.mxu0 0.0
        %530 = vmatpush1.xpose.msra.mxu0 %v318
        %531 = vmatprep.subr.mxu0 0.0
        %532 = vmatpush1.xpose.msra.mxu0 %v317
        %533 = vmatprep.subr.mxu0 0.0
        %534 = vmatpush1.xpose.msra.mxu0 %v316
        %535 = vmatprep.subr.mxu0 0.0
        %536 = vmatpush1.xpose.msra.mxu0 %v315
        %537 = vmatprep.subr.mxu0 0.0
        %538 = vmatpush1.xpose.msra.mxu0 %v314
        %539 = vmatprep.subr.mxu0 0.0
        %540 = vmatpush2.xpose.msra.mxu0 %v345
        %541 = vmatprep.subr.mxu0 0.0
        %542 = vmatpush2.xpose.msra.mxu0 %v344
        %543 = vmatprep.subr.mxu0 0.0
        %544 = vmatpush2.xpose.msra.mxu0 %v343
        %545 = vmatprep.subr.mxu0 0.0
        %546 = vmatpush2.xpose.msra.mxu0 %v342
        %547 = vmatprep.subr.mxu0 0.0
        %548 = vmatpush2.xpose.msra.mxu0 %v341
        %549 = vmatprep.subr.mxu0 0.0
        %550 = vmatpush2.xpose.msra.mxu0 %v340
        %551 = vmatprep.subr.mxu0 0.0
        %552 = vmatpush2.xpose.msra.mxu0 %v339
        %553 = vmatprep.subr.mxu0 0.0
        %554 = vmatpush2.xpose.msra.mxu0 %v338
        %555 = vmatprep.subr.mxu0 0.0
        %556 = vmatpush2.xpose.msra.mxu0 %v337
        %557 = vmatprep.subr.mxu0 0.0
        %558 = vmatpush2.xpose.msra.mxu0 %v336
        %559 = vmatprep.subr.mxu0 0.0
        %560 = vmatpush2.xpose.msra.mxu0 %v335
        %561 = vmatprep.subr.mxu0 0.0
        %562 = vmatpush2.xpose.msra.mxu0 %v334
        %563 = vmatprep.subr.mxu0 0.0
        %564 = vmatpush2.xpose.msra.mxu0 %v333
        %565 = vmatprep.subr.mxu0 0.0
        %566 = vmatpush2.xpose.msra.mxu0 %v332
        %567 = vmatprep.subr.mxu0 0.0
        %568 = vmatpush2.xpose.msra.mxu0 %v331
        %569 = vmatprep.subr.mxu0 0.0
        %570 = vmatpush2.xpose.msra.mxu0 %v330
        %571 = vmatprep.mubr.f32.mxu0 0.0
        %572 = vmatmul.mubr.f32.gmra.mxu0 %v429
        %v573 = vpop.f32.mrf.mxu0
        %v574 = vadd.f32 0.0, %v573
        %v575 = vpop.f32.mrf.mxu0
        %v576 = vadd.f32 0.0, %v575
        %577 = vmatprep.mubr.f32.mxu0 0.0
        %578 = vmatmul.mubr.f32.gmra.mxu0 %v434
        %v579 = vpop.f32.mrf.mxu0
        %v580 = vadd.f32 0.0, %v579
        %v581 = vpop.f32.mrf.mxu0
        %v582 = vadd.f32 0.0, %v581
        %583 = vmatprep.mubr.f32.mxu0 0.0
        %584 = vmatmul.mubr.f32.gmra.mxu0 %v439
        %v585 = vpop.f32.mrf.mxu0
        %v586 = vadd.f32 0.0, %v585
        %v587 = vpop.f32.mrf.mxu0
        %v588 = vadd.f32 0.0, %v587
        %589 = vmatprep.mubr.f32.mxu0 0.0
        %590 = vmatmul.mubr.f32.gmra.mxu0 %v444
        %v591 = vpop.f32.mrf.mxu0
        %v592 = vadd.f32 0.0, %v591
        %v593 = vpop.f32.mrf.mxu0
        %v594 = vadd.f32 0.0, %v593
        %595 = vmatprep.mubr.f32.mxu0 0.0
        %596 = vmatmul.mubr.f32.gmra.mxu0 %v449
        %v597 = vpop.f32.mrf.mxu0
        %v598 = vadd.f32 0.0, %v597
        %v599 = vpop.f32.mrf.mxu0
        %v600 = vadd.f32 0.0, %v599
        %601 = vmatprep.mubr.f32.mxu0 0.0
        %602 = vmatmul.mubr.f32.gmra.mxu0 %v454
        %v603 = vpop.f32.mrf.mxu0
        %v604 = vadd.f32 0.0, %v603
        %v605 = vpop.f32.mrf.mxu0
        %v606 = vadd.f32 0.0, %v605
        %607 = vmatprep.mubr.f32.mxu0 0.0
        %608 = vmatmul.mubr.f32.gmra.mxu0 %v459
        %v609 = vpop.f32.mrf.mxu0
        %v610 = vadd.f32 0.0, %v609
        %v611 = vpop.f32.mrf.mxu0
        %v612 = vadd.f32 0.0, %v611
        %613 = vmatprep.mubr.f32.mxu0 0.0
        %614 = vmatmul.mubr.f32.gmra.mxu0 %v464
        %v615 = vpop.f32.mrf.mxu0
        %v616 = vadd.f32 0.0, %v615
        %v617 = vpop.f32.mrf.mxu0
        %v618 = vadd.f32 0.0, %v617
        %619 = vmatprep.mubr.f32.mxu0 0.0
        %620 = vmatmul.mubr.f32.gmra.mxu0 %v469
        %v621 = vpop.f32.mrf.mxu0
        %v622 = vadd.f32 0.0, %v621
        %v623 = vpop.f32.mrf.mxu0
        %v624 = vadd.f32 0.0, %v623
        %625 = vmatprep.mubr.f32.mxu0 0.0
        %626 = vmatmul.mubr.f32.gmra.mxu0 %v474
        %v627 = vpop.f32.mrf.mxu0
        %v628 = vadd.f32 0.0, %v627
        %v629 = vpop.f32.mrf.mxu0
        %v630 = vadd.f32 0.0, %v629
        %631 = vmatprep.mubr.f32.mxu0 0.0
        %632 = vmatmul.mubr.f32.gmra.mxu0 %v479
        %v633 = vpop.f32.mrf.mxu0
        %v634 = vadd.f32 0.0, %v633
        %v635 = vpop.f32.mrf.mxu0
        %v636 = vadd.f32 0.0, %v635
        %637 = vmatprep.mubr.f32.mxu0 0.0
        %638 = vmatmul.mubr.f32.gmra.mxu0 %v484
        %v639 = vpop.f32.mrf.mxu0
        %v640 = vadd.f32 0.0, %v639
        %v641 = vpop.f32.mrf.mxu0
        %v642 = vadd.f32 0.0, %v641
        %643 = vmatprep.mubr.f32.mxu0 0.0
        %644 = vmatmul.mubr.f32.gmra.mxu0 %v489
        %v645 = vpop.f32.mrf.mxu0
        %v646 = vadd.f32 0.0, %v645
        %v647 = vpop.f32.mrf.mxu0
        %v648 = vadd.f32 0.0, %v647
        %649 = vmatprep.mubr.f32.mxu0 0.0
        %650 = vmatmul.mubr.f32.gmra.mxu0 %v494
        %v651 = vpop.f32.mrf.mxu0
        %v652 = vadd.f32 0.0, %v651
        %v653 = vpop.f32.mrf.mxu0
        %v654 = vadd.f32 0.0, %v653
        %655 = vmatprep.mubr.f32.mxu0 0.0
        %656 = vmatmul.mubr.f32.gmra.mxu0 %v499
        %v657 = vpop.f32.mrf.mxu0
        %v658 = vadd.f32 0.0, %v657
        %v659 = vpop.f32.mrf.mxu0
        %v660 = vadd.f32 0.0, %v659
        %661 = vmatprep.mubr.f32.mxu0 0.0
        %662 = vmatmul.mubr.f32.gmra.mxu0 %v504
        %v663 = vpop.f32.mrf.mxu0
        %v664 = vadd.f32 0.0, %v663
        %v665 = vpop.f32.mrf.mxu0
        %v666 = vadd.f32 0.0, %v665
        %667 = vdwg.mxu0
        %v668 = vmax.f32 %v574, 0.0
        %v669 = vmax.f32 %v576, 0.0
        %v670 = vmax.f32 %v580, 0.0
        %v671 = vmax.f32 %v582, 0.0
        %v672 = vmax.f32 %v586, 0.0
        %v673 = vmax.f32 %v588, 0.0
        %v674 = vmax.f32 %v592, 0.0
        %v675 = vmax.f32 %v594, 0.0
        %v676 = vmax.f32 %v598, 0.0
        %v677 = vmax.f32 %v600, 0.0
        %v678 = vmax.f32 %v604, 0.0
        %v679 = vmax.f32 %v606, 0.0
        %v680 = vmax.f32 %v610, 0.0
        %v681 = vmax.f32 %v612, 0.0
        %v682 = vmax.f32 %v616, 0.0
        %v683 = vmax.f32 %v618, 0.0
        %v684 = vmax.f32 %v622, 0.0
        %v685 = vmax.f32 %v624, 0.0
        %v686 = vmax.f32 %v628, 0.0
        %v687 = vmax.f32 %v630, 0.0
        %v688 = vmax.f32 %v634, 0.0
        %v689 = vmax.f32 %v636, 0.0
        %v690 = vmax.f32 %v640, 0.0
        %v691 = vmax.f32 %v642, 0.0
        %v692 = vmax.f32 %v646, 0.0
        %v693 = vmax.f32 %v648, 0.0
        %v694 = vmax.f32 %v652, 0.0
        %v695 = vmax.f32 %v654, 0.0
        %v696 = vmax.f32 %v658, 0.0
        %v697 = vmax.f32 %v660, 0.0
        %v698 = vmax.f32 %v664, 0.0
        %v699 = vmax.f32 %v666, 0.0
        %v700 = vld [vmem:[#allocation2] sm:$0x3]
        %v701 = vadd.f32 %v668, %v670
        %v702 = vadd.f32 %v701, %v672
        %v703 = vadd.f32 %v702, %v674
        %v704 = vadd.f32 %v703, %v676
        %v705 = vadd.f32 %v704, %v678
        %v706 = vadd.f32 %v705, %v680
        %v707 = vadd.f32 %v706, %v682
        %v708 = vadd.f32 %v707, %v684
        %v709 = vadd.f32 %v708, %v686
        %v710 = vadd.f32 %v709, %v688
        %v711 = vadd.f32 %v710, %v690
        %v712 = vadd.f32 %v711, %v692
        %v713 = vadd.f32 %v712, %v694
        %v714 = vadd.f32 %v713, %v696
        %v715 = vadd.f32 %v714, %v698
        %v716 = vrot.slane %v715, 4
        %v717 = vadd.f32 %v715, %v716
        %v718 = vrot.slane %v717, 2
        %v719 = vadd.f32 %v717, %v718
        %v720 = vrot.slane %v719, 1
        %v721 = vadd.f32 %v719, %v720
        %v722 = vadd.f32 %v669, %v671
        %v723 = vadd.f32 %v722, %v673
        %v724 = vadd.f32 %v723, %v675
        %v725 = vadd.f32 %v724, %v677
        %v726 = vadd.f32 %v725, %v679
        %v727 = vadd.f32 %v726, %v681
        %v728 = vadd.f32 %v727, %v683
        %v729 = vadd.f32 %v728, %v685
        %v730 = vadd.f32 %v729, %v687
        %v731 = vadd.f32 %v730, %v689
        %v732 = vadd.f32 %v731, %v691
        %v733 = vadd.f32 %v732, %v693
        %v734 = vadd.f32 %v733, %v695
        %v735 = vadd.f32 %v734, %v697
        %v736 = vadd.f32 %v735, %v699
        %v737 = vrot.slane %v736, 4
        %v738 = vadd.f32 %v736, %v737
        %v739 = vrot.slane %v738, 2
        %v740 = vadd.f32 %v738, %v739
        %v741 = vrot.slane %v740, 1
        %v742 = vadd.f32 %v740, %v741
        %v745 = vcombine.low %v721, %v742
        %v747 = vunpack.c.l.s4 1966171168
        %v748 = vunpack.c.0.s8 %v747
        %v749 = vlaneseq
        %v750 = vshrl.u32 %v749, 7
        %v751 = vsub.s32 %v748, %v750
        %v752 = vrot.slane %v745, %v751
        %v754 = vunpack.c.l.s4 1966171168
        %v755 = vunpack.c.0.s8 %v754
        %v756 = vlaneseq
        %v757 = vshrl.u32 %v756, 7
        %v758 = vsub.s32 %v755, %v757
        %v759 = vrot.slane %v752, %v758
        %v761 = vadd.f32 %v700, %v759
        %v762 = vlaneseq
        %vm763 = vcmp.ge.s32.totalorder %v762, 0
        %vm764 = vcmp.lt.s32.totalorder %v762, 256
        %vm765 = vmand %vm763, %vm764
        %766 = vst.msk [vmem:[#allocation2] sm:$0x3] %vm765, %v761
        %v767 = vld [vmem:[#allocation3] sm:$0x3]
        %v768 = vmul.f32 %v668, %v668
        %v769 = vmul.f32 %v669, %v669
        %v770 = vmul.f32 %v670, %v670
        %v771 = vmul.f32 %v671, %v671
        %v772 = vmul.f32 %v672, %v672
        %v773 = vmul.f32 %v673, %v673
        %v774 = vmul.f32 %v674, %v674
        %v775 = vmul.f32 %v675, %v675
        %v776 = vmul.f32 %v676, %v676
        %v777 = vmul.f32 %v677, %v677
        %v778 = vmul.f32 %v678, %v678
        %v779 = vmul.f32 %v679, %v679
        %v780 = vmul.f32 %v680, %v680
        %v781 = vmul.f32 %v681, %v681
        %v782 = vmul.f32 %v682, %v682
        %v783 = vmul.f32 %v683, %v683
        %v784 = vmul.f32 %v684, %v684
        %v785 = vmul.f32 %v685, %v685
        %v786 = vmul.f32 %v686, %v686
        %v787 = vmul.f32 %v687, %v687
        %v788 = vmul.f32 %v688, %v688
        %v789 = vmul.f32 %v689, %v689
        %v790 = vmul.f32 %v690, %v690
        %v791 = vmul.f32 %v691, %v691
        %v792 = vmul.f32 %v692, %v692
        %v793 = vmul.f32 %v693, %v693
        %v794 = vmul.f32 %v694, %v694
        %v795 = vmul.f32 %v695, %v695
        %v796 = vmul.f32 %v696, %v696
        %v797 = vmul.f32 %v697, %v697
        %v798 = vmul.f32 %v698, %v698
        %v799 = vmul.f32 %v699, %v699
        %v800 = vadd.f32 %v768, %v770
        %v801 = vadd.f32 %v800, %v772
        %v802 = vadd.f32 %v801, %v774
        %v803 = vadd.f32 %v802, %v776
        %v804 = vadd.f32 %v803, %v778
        %v805 = vadd.f32 %v804, %v780
        %v806 = vadd.f32 %v805, %v782
        %v807 = vadd.f32 %v806, %v784
        %v808 = vadd.f32 %v807, %v786
        %v809 = vadd.f32 %v808, %v788
        %v810 = vadd.f32 %v809, %v790
        %v811 = vadd.f32 %v810, %v792
        %v812 = vadd.f32 %v811, %v794
        %v813 = vadd.f32 %v812, %v796
        %v814 = vadd.f32 %v813, %v798
        %v815 = vrot.slane %v814, 4
        %v816 = vadd.f32 %v814, %v815
        %v817 = vrot.slane %v816, 2
        %v818 = vadd.f32 %v816, %v817
        %v819 = vrot.slane %v818, 1
        %v820 = vadd.f32 %v818, %v819
        %v821 = vadd.f32 %v769, %v771
        %v822 = vadd.f32 %v821, %v773
        %v823 = vadd.f32 %v822, %v775
        %v824 = vadd.f32 %v823, %v777
        %v825 = vadd.f32 %v824, %v779
        %v826 = vadd.f32 %v825, %v781
        %v827 = vadd.f32 %v826, %v783
        %v828 = vadd.f32 %v827, %v785
        %v829 = vadd.f32 %v828, %v787
        %v830 = vadd.f32 %v829, %v789
        %v831 = vadd.f32 %v830, %v791
        %v832 = vadd.f32 %v831, %v793
        %v833 = vadd.f32 %v832, %v795
        %v834 = vadd.f32 %v833, %v797
        %v835 = vadd.f32 %v834, %v799
        %v836 = vrot.slane %v835, 4
        %v837 = vadd.f32 %v835, %v836
        %v838 = vrot.slane %v837, 2
        %v839 = vadd.f32 %v837, %v838
        %v840 = vrot.slane %v839, 1
        %v841 = vadd.f32 %v839, %v840
        %v844 = vcombine.low %v820, %v841
        %v846 = vunpack.c.l.s4 1966171168
        %v847 = vunpack.c.0.s8 %v846
        %v848 = vlaneseq
        %v849 = vshrl.u32 %v848, 7
        %v850 = vsub.s32 %v847, %v849
        %v851 = vrot.slane %v844, %v850
        %v853 = vunpack.c.l.s4 1966171168
        %v854 = vunpack.c.0.s8 %v853
        %v855 = vlaneseq
        %v856 = vshrl.u32 %v855, 7
        %v857 = vsub.s32 %v854, %v856
        %v858 = vrot.slane %v851, %v857
        %v860 = vadd.f32 %v767, %v858
        %861 = vst.msk [vmem:[#allocation3] sm:$0x3] %vm765, %v860
        %p862 = scmp.eq.s32.totalorder %s25, 1
        // Predicated region
        $region57: #{bilinear_decoder.2} parent=39 // pred_check
          %p863 = pneg %p862
        $region58: #{bilinear_decoder.2} parent=39 // pred_check_branch
          %865 = sbr.rel (%p863) target = $region60
        $region59: #{bilinear_decoder.2} parent=39 // pred_region
          %v866 = vld [vmem:[#allocation2] sm:$0x3]
          %v867 = vrcp.pop 256.0
          %v868 = vmul.f32 %v866, %v867
          %v869 = vld [vmem:[#allocation3] sm:$0x3]
          %v870 = vmul.f32 %v869, %v867
          %v871 = vmul.f32 %v868, %v868
          %v872 = vsub.f32 %v870, %v871
          %v873 = vmax.f32 %v872, 0.0
          %v874 = vadd.f32 %v873, 1e-05
          %v875 = vrsqrt.pop %v874
          %v876 = vld [vmem:[%s3] sm:$0x3]
          %v877 = vmul.f32 %v876, %v875
          %878 = vst.msk [vmem:[%s5] sm:$0x3] %vm765, %v877
          %v879 = vld [vmem:[#allocation4] sm:$0x1]
          %v880 = vmul.f32 %v877, %v868
          %v882 = vlaneseq
          %v883 = vshrl.u32 %v882, 7
          %v884 = vsub.s32 0, %v883
          %v885 = vrot.slane %v880, %v884
          %v886 = vlaneseq
          %v887 = vshrl.u32 %v886, 7
          %v888 = vsub.s32 1, %v887
          %v889 = vrot.slane %v880, %v888
          %vm892 = vcmask 1040384
          %v893 = vsel %vm892, %v885, 0.0
          %v894 = vsel %vm892, %v889, 0.0
          %v895 = vadd.f32 %v893, %v894
          %896 = vadd.xlane.f32.xlu0 %v895
          %v897 = vpop.xlane.xlu0 %896
          %v898 = vsub.f32 %v879, %v897
          %vm899 = vcmask 0
          %900 = vst.msk [vmem:[#allocation11] sm:$0x1] %vm899, %v898
        $region60: #{bilinear_decoder.2} parent=39 // pred_fallthru
          _
        // Predicated region
        $region61: #{bilinear_decoder.2} parent=39 // pred_check
          %p901 = pneg %p148
        $region62: #{bilinear_decoder.2} parent=39 // pred_check_branch
          %903 = sbr.rel (%p901) target = $region64
        $region63: #{bilinear_decoder.2} parent=39 // pred_region
          _
        $region64: #{bilinear_decoder.2} parent=39 // pred_fallthru
          _
        // Predicated region
        $region65: #{bilinear_decoder.2} parent=39 // pred_check
          %p904 = pneg %p169
        $region66: #{bilinear_decoder.2} parent=39 // pred_check_branch
          %906 = sbr.rel (%p904) target = $region68
        $region67: #{bilinear_decoder.2} parent=39 // pred_region
          %s908 = ssub.s32 16, 16
          %909 = vsyncadd [#allocation7], %s908
          %s911 = sshll.u32 [#allocation11], 4
          %s912 = int_to_ptr.vmem [resolvable:$true] %s911
          %914 = dma.vmem_to_hbm [thread:$0]  %s912, 16, %s6, [#allocation7]
        $region68: #{bilinear_decoder.2} parent=39 // pred_fallthru
          _
        // Predicated region
        $region69: #{bilinear_decoder.2} parent=39 // pred_check
          %p915 = pneg %p148
        $region70: #{bilinear_decoder.2} parent=39 // pred_check_branch
          %917 = sbr.rel (%p915) target = $region72
        $region71: #{bilinear_decoder.2} parent=39 // pred_region
          _
        $region72: #{bilinear_decoder.2} parent=39 // pred_fallthru
          _
        // Predicated region
        $region73: #{bilinear_decoder.2} parent=39 // pred_check
          %p918 = pneg %p169
        $region74: #{bilinear_decoder.2} parent=39 // pred_check_branch
          %920 = sbr.rel (%p918) target = $region76
        $region75: #{bilinear_decoder.2} parent=39 // pred_region
          %921 = dma.done [#allocation7], 16
        $region76: #{bilinear_decoder.2} parent=39 // pred_fallthru
          _
      $region40: #{bilinear_decoder.2} parent=5 // pred_fallthru
        _
      %p922 = scmp.le.s32.totalorder 2, %s20
      // Predicated region
      $region77: #{bilinear_decoder.2} parent=5 // pred_check
        %p923 = pneg %p922
      $region78: #{bilinear_decoder.2} parent=5 // pred_check_branch
        %925 = sbr.rel (%p923) target = $region80
      $region79: #{bilinear_decoder.2} parent=5 // pred_region
        %s926 = ssub.s32 %s20, 2
      $region80: #{bilinear_decoder.2} parent=5 // pred_fallthru
        _
    $region6: #{bilinear_decoder.2} parent=1 // loop_footer
      %s24 = sadd.s32 1, %s20
    $region7: #{bilinear_decoder.2} parent=1 // loop_footer_branch
      %19 = sbr.rel target = $region3
    $region8: #{bilinear_decoder.2} parent=1 // loop_exit
      _
    %927 = vsyncpa [#allocation6], 1
    %s928 = scalar_lea.sflag [#allocation6], 1
    %929 = vsyncpa %s928, 1
    %930 = vsyncpa [#allocation9], 1
    %931 = vsyncpa [#allocation7], 1
    %s932 = scalar_lea.sflag [#allocation7], 1
    %933 = vsyncpa %s932, 1

// kernel: bilinear_decoder.3
$region0: #{bilinear_decoder.3}
  #allocation0 [shape = 'u32[]', space=smem, size = 0x4, offset = 0x4, fixed_abs, tag = 'smem constant byte address 0x4 - core index']
  #allocation1 [shape = 'u32[144,128]{1,0:T(1,128)}', space=vmem, size = 0x12000, scoped, tag = 'internal scratch']
  #allocation2 [shape = 'f32[1,1]{1,0:T(1,128)S(1)}', space=vmem, size = 0x200, scoped, tag = 'scoped memory for bilinear_decoder.3']
  %s0 = inlined_call_operand.vmem [shape: f32[256,128], index: 0, kind: input, shape index: {}, may-alias: {0,1}]
  %s1 = inlined_call_operand.vmem [shape: f32[256,128], index: 1, kind: input, shape index: {}, may-alias: {0,1}]
  %s2 = inlined_call_operand.vmem [shape: f32[128,128], index: 2, kind: input, shape index: {}]
  %s3 = inlined_call_operand.vmem [shape: f32[1,256], index: 3, kind: input, shape index: {}]
  %s4 = inlined_call_operand.<no memory space> [shape: f32[1,1], index: 4, kind: input, shape index: {}]
  %s5 = inlined_call_operand.vmem [shape: f32[256,1], index: 5, kind: output, shape index: {}]
  %s6 = sld [smem:[#allocation0]]
  $region53: #{bilinear_decoder.3} parent=0
    _
  %s8 = ssub.s32 1, %s6
  %s9 = scalar_select 0, %s8, %s6
  %v10 = vstv %s4
  %11 = vst [vmem:[#allocation2] sm:$0x1] %v10
  loop: start=0, step=1, limit=4
  $region2: #{bilinear_decoder.3} parent=0 // loop_pre_header
    _
  $region3: #{bilinear_decoder.3} parent=0 // loop_header
    %s13 = sphi 0, %s17
    %p14 = scmp.ge.s32.totalorder %s13, 4
    %s23 = sphi 0, %s25
    %s26 = sphi 0, %s23
    %s27 = sphi 0, %s26
    %s43 = sphi 0, %s27
    %s47 = sphi 0, %s47
    %s49 = sphi 0, %s47
    %s50 = sphi 0, %s49
    %s64 = sphi 0, %s50
    %s68 = sphi 0, %s68
    %s70 = sphi 0, %s68
    %s71 = sphi 0, %s70
    %s85 = sphi 0, %s71
    %s89 = sphi 0, %s89
    %s91 = sphi 0, %s89
    %s92 = sphi 0, %s91
    %s106 = sphi 0, %s92
    %s110 = sphi 0, %s110
    %s112 = sphi 0, %s110
    %s113 = sphi 0, %s112
    %s127 = sphi 0, %s113
    %s133 = sphi 0, %s135
    %s136 = sphi 0, %s133
    %s137 = sphi 0, %s136
    %s153 = sphi 0, %s137
  $region4: #{bilinear_decoder.3} parent=0 // loop_header_branch
    %16 = sbr.rel (%p14) target = $region8
  $region5: #{bilinear_decoder.3} parent=0 // loop_body
    %s18 = ssub.s32 %s13, 1
    %s19 = ssub.s32 %s13, 2
    %s20 = sadd.s32 %s13, 1
    %s21 = ssub.s32 %s13, %s20
    %p22 = scmp.eq.s32.totalorder %s21, 0
    %s24 = sadd.s32 %s23, 1
    %s25 = scalar_select %p22, %s23, %s24
    %p28 = pneg %p22
    %p29 = scmp.eq.s32.totalorder %s13, 1
    %p30 = por %p28, %p29
    %p31 = scmp.ne.s32.totalorder %s23, %s26
    %p32 = scmp.eq.s32.totalorder %s13, 0
    %p33 = por %p31, %p32
    %p34 = scmp.ne.s32.totalorder %s23, %s26
    %p35 = scmp.eq.s32.totalorder %s18, 1
    %p36 = por %p34, %p35
    %p37 = scmp.ne.s32.totalorder %s26, %s27
    %p38 = scmp.eq.s32.totalorder %s18, 0
    %p39 = por %p37, %p38
    %p40 = scmp.ne.s32.totalorder %s26, %s27
    %p41 = scmp.eq.s32.totalorder %s19, 1
    %p42 = por %p40, %p41
    %p44 = scmp.ne.s32.totalorder %s27, %s43
    %p45 = scmp.eq.s32.totalorder %s19, 0
    %p46 = por %p44, %p45
    %s48 = sadd.s32 %s47, 1
    %p51 = scmp.eq.s32.totalorder %s13, 1
    %p52 = scmp.ne.s32.totalorder %s47, %s49
    %p53 = scmp.eq.s32.totalorder %s13, 0
    %p54 = por %p52, %p53
    %p55 = scmp.ne.s32.totalorder %s47, %s49
    %p56 = scmp.eq.s32.totalorder %s18, 1
    %p57 = por %p55, %p56
    %p58 = scmp.ne.s32.totalorder %s49, %s50
    %p59 = scmp.eq.s32.totalorder %s18, 0
    %p60 = por %p58, %p59
    %p61 = scmp.ne.s32.totalorder %s49, %s50
    %p62 = scmp.eq.s32.totalorder %s19, 1
    %p63 = por %p61, %p62
    %p65 = scmp.ne.s32.totalorder %s50, %s64
    %p66 = scmp.eq.s32.totalorder %s19, 0
    %p67 = por %p65, %p66
    %s69 = sadd.s32 %s68, 1
    %p72 = scmp.eq.s32.totalorder %s13, 1
    %p73 = scmp.ne.s32.totalorder %s68, %s70
    %p74 = scmp.eq.s32.totalorder %s13, 0
    %p75 = por %p73, %p74
    %p76 = scmp.ne.s32.totalorder %s68, %s70
    %p77 = scmp.eq.s32.totalorder %s18, 1
    %p78 = por %p76, %p77
    %p79 = scmp.ne.s32.totalorder %s70, %s71
    %p80 = scmp.eq.s32.totalorder %s18, 0
    %p81 = por %p79, %p80
    %p82 = scmp.ne.s32.totalorder %s70, %s71
    %p83 = scmp.eq.s32.totalorder %s19, 1
    %p84 = por %p82, %p83
    %p86 = scmp.ne.s32.totalorder %s71, %s85
    %p87 = scmp.eq.s32.totalorder %s19, 0
    %p88 = por %p86, %p87
    %s90 = sadd.s32 %s89, 1
    %p93 = scmp.eq.s32.totalorder %s13, 1
    %p94 = scmp.ne.s32.totalorder %s89, %s91
    %p95 = scmp.eq.s32.totalorder %s13, 0
    %p96 = por %p94, %p95
    %p97 = scmp.ne.s32.totalorder %s89, %s91
    %p98 = scmp.eq.s32.totalorder %s18, 1
    %p99 = por %p97, %p98
    %p100 = scmp.ne.s32.totalorder %s91, %s92
    %p101 = scmp.eq.s32.totalorder %s18, 0
    %p102 = por %p100, %p101
    %p103 = scmp.ne.s32.totalorder %s91, %s92
    %p104 = scmp.eq.s32.totalorder %s19, 1
    %p105 = por %p103, %p104
    %p107 = scmp.ne.s32.totalorder %s92, %s106
    %p108 = scmp.eq.s32.totalorder %s19, 0
    %p109 = por %p107, %p108
    %s111 = sadd.s32 %s110, 1
    %p114 = scmp.eq.s32.totalorder %s13, 1
    %p115 = scmp.ne.s32.totalorder %s110, %s112
    %p116 = scmp.eq.s32.totalorder %s13, 0
    %p117 = por %p115, %p116
    %p118 = scmp.ne.s32.totalorder %s110, %s112
    %p119 = scmp.eq.s32.totalorder %s18, 1
    %p120 = por %p118, %p119
    %p121 = scmp.ne.s32.totalorder %s112, %s113
    %p122 = scmp.eq.s32.totalorder %s18, 0
    %p123 = por %p121, %p122
    %p124 = scmp.ne.s32.totalorder %s112, %s113
    %p125 = scmp.eq.s32.totalorder %s19, 1
    %p126 = por %p124, %p125
    %p128 = scmp.ne.s32.totalorder %s113, %s127
    %p129 = scmp.eq.s32.totalorder %s19, 0
    %p130 = por %p128, %p129
    %s131 = ssub.s32 %s13, %s20
    %p132 = scmp.eq.s32.totalorder %s131, 0
    %s134 = sadd.s32 %s133, 1
    %s135 = scalar_select %p132, %s133, %s134
    %p138 = pneg %p132
    %p139 = scmp.eq.s32.totalorder %s13, 1
    %p140 = por %p138, %p139
    %p141 = scmp.ne.s32.totalorder %s133, %s136
    %p142 = scmp.eq.s32.totalorder %s13, 0
    %p143 = por %p141, %p142
    %p144 = scmp.ne.s32.totalorder %s133, %s136
    %p145 = scmp.eq.s32.totalorder %s18, 1
    %p146 = por %p144, %p145
    %p147 = scmp.ne.s32.totalorder %s136, %s137
    %p148 = scmp.eq.s32.totalorder %s18, 0
    %p149 = por %p147, %p148
    %p150 = scmp.ne.s32.totalorder %s136, %s137
    %p151 = scmp.eq.s32.totalorder %s19, 1
    %p152 = por %p150, %p151
    %p154 = scmp.ne.s32.totalorder %s137, %s153
    %p155 = scmp.eq.s32.totalorder %s19, 0
    %p156 = por %p154, %p155
    %p157 = scmp.le.s32.totalorder 1, %s13
    %p158 = scmp.lt.s32.totalorder %s13, 3
    %p159 = pnand %p157, %p158
    %p160 = pneg %p159
    // Predicated region
    $region9: #{bilinear_decoder.3} parent=5 // pred_check
      _
    $region10: #{bilinear_decoder.3} parent=5 // pred_check_branch
      %162 = sbr.rel (%p159) target = $region12
    $region11: #{bilinear_decoder.3} parent=5 // pred_region
      %s163 = ssub.s32 %s13, 1
      // Predicated region
      $region13: #{bilinear_decoder.3} parent=11 // pred_check
        %p164 = pneg %p60
      $region14: #{bilinear_decoder.3} parent=11 // pred_check_branch
        %166 = sbr.rel (%p164) target = $region16
      $region15: #{bilinear_decoder.3} parent=11 // pred_region
        _
      $region16: #{bilinear_decoder.3} parent=11 // pred_fallthru
        _
      // Predicated region
      $region17: #{bilinear_decoder.3} parent=11 // pred_check
        %p167 = pneg %p81
      $region18: #{bilinear_decoder.3} parent=11 // pred_check_branch
        %169 = sbr.rel (%p167) target = $region20
      $region19: #{bilinear_decoder.3} parent=11 // pred_region
        _
      $region20: #{bilinear_decoder.3} parent=11 // pred_fallthru
        _
      // Predicated region
      $region21: #{bilinear_decoder.3} parent=11 // pred_check
        %p170 = pneg %p102
      $region22: #{bilinear_decoder.3} parent=11 // pred_check_branch
        %172 = sbr.rel (%p170) target = $region24
      $region23: #{bilinear_decoder.3} parent=11 // pred_region
        _
      $region24: #{bilinear_decoder.3} parent=11 // pred_fallthru
        _
      // Predicated region
      $region25: #{bilinear_decoder.3} parent=11 // pred_check
        %p173 = pneg %p123
      $region26: #{bilinear_decoder.3} parent=11 // pred_check_branch
        %175 = sbr.rel (%p173) target = $region28
      $region27: #{bilinear_decoder.3} parent=11 // pred_region
        _
      $region28: #{bilinear_decoder.3} parent=11 // pred_fallthru
        _
    $region12: #{bilinear_decoder.3} parent=5 // pred_fallthru
      _
    %p176 = scmp.lt.s32.totalorder %s13, 2
    // Predicated region
    $region29: #{bilinear_decoder.3} parent=5 // pred_check
      %p177 = pneg %p176
    $region30: #{bilinear_decoder.3} parent=5 // pred_check_branch
      %179 = sbr.rel (%p177) target = $region32
    $region31: #{bilinear_decoder.3} parent=5 // pred_region
      // Predicated region
      $region33: #{bilinear_decoder.3} parent=31 // pred_check
        %p180 = pneg %p33
      $region34: #{bilinear_decoder.3} parent=31 // pred_check_branch
        %182 = sbr.rel (%p180) target = $region36
      $region35: #{bilinear_decoder.3} parent=31 // pred_region
        %s183 = smul.u32 16, %s13
        %p184 = scmp.lt.s32.totalorder %s183, 31
        %s185 = scalar_select %p184, %s183, 31
        %s186 = smul.addr %s185, 8
        %s187 = scalar_lea.vmem %s0, %s186
        %s188 = smul.u32 16, %s13
      $region36: #{bilinear_decoder.3} parent=31 // pred_fallthru
        _
    $region32: #{bilinear_decoder.3} parent=5 // pred_fallthru
      _
    %p189 = scmp.le.s32.totalorder 1, %s13
    %p190 = scmp.lt.s32.totalorder %s13, 3
    %p191 = pnand %p189, %p190
    %p192 = pneg %p191
    // Predicated region
    $region37: #{bilinear_decoder.3} parent=5 // pred_check
      _
    $region38: #{bilinear_decoder.3} parent=5 // pred_check_branch
      %194 = sbr.rel (%p191) target = $region40
    $region39: #{bilinear_decoder.3} parent=5 // pred_region
      %s195 = ssub.s32 %s13, 1
      %s196 = smul.u32 16, %s18
      %p197 = scmp.lt.s32.totalorder %s196, 31
      %s198 = scalar_select %p197, %s196, 31
      %s199 = smul.addr %s198, 8
      %s200 = scalar_lea.vmem %s0, %s199
      %p201 = pneg %p39
      %p202 = pneg %p36
      %p203 = pneg %p60
      %p204 = pneg %p57
      %p205 = pneg %p81
      %p206 = pneg %p78
      %p207 = pneg %p102
      %p208 = pneg %p99
      %p209 = pneg %p123
      %p210 = pneg %p120
      %p211 = pneg %p149
      %p212 = pneg %p146
      %s213 = smul.u32 16, %s18
      %p214 = scmp.lt.s32.totalorder %s213, 31
      %s215 = scalar_select %p214, %s213, 31
      %s216 = smul.addr %s215, 8
      %s217 = scalar_lea.vmem %s5, %s216
      %s218 = smul.u32 16, %s18
      %p219 = scmp.lt.s32.totalorder %s218, 31
      %s220 = scalar_select %p219, %s218, 31
      %s221 = smul.addr %s220, 8
      %s222 = scalar_lea.vmem %s0, %s221
      %s223 = smul.u32 16, %s18
      %s224 = smul.u32 16, %s18
      %p225 = scmp.lt.s32.totalorder %s224, 31
      %s226 = scalar_select %p225, %s224, 31
      %s227 = smul.addr %s226, 8
      %s228 = scalar_lea.vmem %s5, %s227
      %s229 = smul.u32 16, %s18
      %v230 = vld [vmem:[%s222] sm:$0xff]
      %v231 = vld [vmem:[%s222 + $0x8] sm:$0xff]
      %v232 = vld [vmem:[%s222 + $0x10] sm:$0xff]
      %v233 = vld [vmem:[%s222 + $0x18] sm:$0xff]
      %v234 = vld [vmem:[%s222 + $0x20] sm:$0xff]
      %v235 = vld [vmem:[%s222 + $0x28] sm:$0xff]
      %v236 = vld [vmem:[%s222 + $0x30] sm:$0xff]
      %v237 = vld [vmem:[%s222 + $0x38] sm:$0xff]
      %v238 = vld [vmem:[%s222 + $0x40] sm:$0xff]
      %v239 = vld [vmem:[%s222 + $0x48] sm:$0xff]
      %v240 = vld [vmem:[%s222 + $0x50] sm:$0xff]
      %v241 = vld [vmem:[%s222 + $0x58] sm:$0xff]
      %v242 = vld [vmem:[%s222 + $0x60] sm:$0xff]
      %v243 = vld [vmem:[%s222 + $0x68] sm:$0xff]
      %v244 = vld [vmem:[%s222 + $0x70] sm:$0xff]
      %v245 = vld [vmem:[%s222 + $0x78] sm:$0xff]
      %v246 = vld [vmem:[%s1] sm:$0xff]
      %v247 = vld [vmem:[%s1 + $0x8] sm:$0xff]
      %v248 = vld [vmem:[%s1 + $0x10] sm:$0xff]
      %v249 = vld [vmem:[%s1 + $0x18] sm:$0xff]
      %v250 = vld [vmem:[%s1 + $0x20] sm:$0xff]
      %v251 = vld [vmem:[%s1 + $0x28] sm:$0xff]
      %v252 = vld [vmem:[%s1 + $0x30] sm:$0xff]
      %v253 = vld [vmem:[%s1 + $0x38] sm:$0xff]
      %v254 = vld [vmem:[%s1 + $0x40] sm:$0xff]
      %v255 = vld [vmem:[%s1 + $0x48] sm:$0xff]
      %v256 = vld [vmem:[%s1 + $0x50] sm:$0xff]
      %v257 = vld [vmem:[%s1 + $0x58] sm:$0xff]
      %v258 = vld [vmem:[%s1 + $0x60] sm:$0xff]
      %v259 = vld [vmem:[%s1 + $0x68] sm:$0xff]
      %v260 = vld [vmem:[%s1 + $0x70] sm:$0xff]
      %v261 = vld [vmem:[%s1 + $0x78] sm:$0xff]
      %v262 = vld [vmem:[%s1 + $0x80] sm:$0xff]
      %v263 = vld [vmem:[%s1 + $0x88] sm:$0xff]
      %v264 = vld [vmem:[%s1 + $0x90] sm:$0xff]
      %v265 = vld [vmem:[%s1 + $0x98] sm:$0xff]
      %v266 = vld [vmem:[%s1 + $0xa0] sm:$0xff]
      %v267 = vld [vmem:[%s1 + $0xa8] sm:$0xff]
      %v268 = vld [vmem:[%s1 + $0xb0] sm:$0xff]
      %v269 = vld [vmem:[%s1 + $0xb8] sm:$0xff]
      %v270 = vld [vmem:[%s1 + $0xc0] sm:$0xff]
      %v271 = vld [vmem:[%s1 + $0xc8] sm:$0xff]
      %v272 = vld [vmem:[%s1 + $0xd0] sm:$0xff]
      %v273 = vld [vmem:[%s1 + $0xd8] sm:$0xff]
      %v274 = vld [vmem:[%s1 + $0xe0] sm:$0xff]
      %v275 = vld [vmem:[%s1 + $0xe8] sm:$0xff]
      %v276 = vld [vmem:[%s1 + $0xf0] sm:$0xff]
      %v277 = vld [vmem:[%s1 + $0xf8] sm:$0xff]
      %v278 = vld [vmem:[%s2] sm:$0xff]
      %v279 = vld [vmem:[%s2 + $0x8] sm:$0xff]
      %v280 = vld [vmem:[%s2 + $0x10] sm:$0xff]
      %v281 = vld [vmem:[%s2 + $0x18] sm:$0xff]
      %v282 = vld [vmem:[%s2 + $0x20] sm:$0xff]
      %v283 = vld [vmem:[%s2 + $0x28] sm:$0xff]
      %v284 = vld [vmem:[%s2 + $0x30] sm:$0xff]
      %v285 = vld [vmem:[%s2 + $0x38] sm:$0xff]
      %v286 = vld [vmem:[%s2 + $0x40] sm:$0xff]
      %v287 = vld [vmem:[%s2 + $0x48] sm:$0xff]
      %v288 = vld [vmem:[%s2 + $0x50] sm:$0xff]
      %v289 = vld [vmem:[%s2 + $0x58] sm:$0xff]
      %v290 = vld [vmem:[%s2 + $0x60] sm:$0xff]
      %v291 = vld [vmem:[%s2 + $0x68] sm:$0xff]
      %v292 = vld [vmem:[%s2 + $0x70] sm:$0xff]
      %v293 = vld [vmem:[%s2 + $0x78] sm:$0xff]
      %294 = vmatprep.subr.mxu0 0.0
      %295 = vmatpush1.msra.mxu0 %v293
      %296 = vmatprep.subr.mxu0 0.0
      %297 = vmatpush1.msra.mxu0 %v292
      %298 = vmatprep.subr.mxu0 0.0
      %299 = vmatpush1.msra.mxu0 %v291
      %300 = vmatprep.subr.mxu0 0.0
      %301 = vmatpush1.msra.mxu0 %v290
      %302 = vmatprep.subr.mxu0 0.0
      %303 = vmatpush1.msra.mxu0 %v289
      %304 = vmatprep.subr.mxu0 0.0
      %305 = vmatpush1.msra.mxu0 %v288
      %306 = vmatprep.subr.mxu0 0.0
      %307 = vmatpush1.msra.mxu0 %v287
      %308 = vmatprep.subr.mxu0 0.0
      %309 = vmatpush1.msra.mxu0 %v286
      %310 = vmatprep.subr.mxu0 0.0
      %311 = vmatpush1.msra.mxu0 %v285
      %312 = vmatprep.subr.mxu0 0.0
      %313 = vmatpush1.msra.mxu0 %v284
      %314 = vmatprep.subr.mxu0 0.0
      %315 = vmatpush1.msra.mxu0 %v283
      %316 = vmatprep.subr.mxu0 0.0
      %317 = vmatpush1.msra.mxu0 %v282
      %318 = vmatprep.subr.mxu0 0.0
      %319 = vmatpush1.msra.mxu0 %v281
      %320 = vmatprep.subr.mxu0 0.0
      %321 = vmatpush1.msra.mxu0 %v280
      %322 = vmatprep.subr.mxu0 0.0
      %323 = vmatpush1.msra.mxu0 %v279
      %324 = vmatprep.subr.mxu0 0.0
      %325 = vmatpush1.msra.mxu0 %v278
      %326 = vmatprep.subr.mxu0 0.0
      %327 = vmatpush2.msra.mxu0 0.0
      %328 = vmatprep.subr.mxu0 0.0
      %329 = vmatpush2.msra.mxu0 0.0
      %330 = vmatprep.subr.mxu0 0.0
      %331 = vmatpush2.msra.mxu0 0.0
      %332 = vmatprep.subr.mxu0 0.0
      %333 = vmatpush2.msra.mxu0 0.0
      %334 = vmatprep.subr.mxu0 0.0
      %335 = vmatpush2.msra.mxu0 0.0
      %336 = vmatprep.subr.mxu0 0.0
      %337 = vmatpush2.msra.mxu0 0.0
      %338 = vmatprep.subr.mxu0 0.0
      %339 = vmatpush2.msra.mxu0 0.0
      %340 = vmatprep.subr.mxu0 0.0
      %341 = vmatpush2.msra.mxu0 0.0
      %342 = vmatprep.subr.mxu0 0.0
      %343 = vmatpush2.msra.mxu0 0.0
      %344 = vmatprep.subr.mxu0 0.0
      %345 = vmatpush2.msra.mxu0 0.0
      %346 = vmatprep.subr.mxu0 0.0
      %347 = vmatpush2.msra.mxu0 0.0
      %348 = vmatprep.subr.mxu0 0.0
      %349 = vmatpush2.msra.mxu0 0.0
      %350 = vmatprep.subr.mxu0 0.0
      %351 = vmatpush2.msra.mxu0 0.0
      %352 = vmatprep.subr.mxu0 0.0
      %353 = vmatpush2.msra.mxu0 0.0
      %354 = vmatprep.subr.mxu0 0.0
      %355 = vmatpush2.msra.mxu0 0.0
      %356 = vmatprep.subr.mxu0 0.0
      %357 = vmatpush2.msra.mxu0 0.0
      %358 = vmatprep.mubr.f32.mxu0 0.0
      %359 = vmatmul.mubr.f32.gmra.mxu0 %v230
      %v360 = vpop.f32.mrf.mxu0
      %v361 = vadd.f32 0.0, %v360
      %v362 = vpop.f32.mrf.mxu0
      %363 = vmatprep.mubr.f32.mxu0 0.0
      %364 = vmatmul.mubr.f32.gmra.mxu0 %v231
      %v365 = vpop.f32.mrf.mxu0
      %v366 = vadd.f32 0.0, %v365
      %v367 = vpop.f32.mrf.mxu0
      %368 = vmatprep.mubr.f32.mxu0 0.0
      %369 = vmatmul.mubr.f32.gmra.mxu0 %v232
      %v370 = vpop.f32.mrf.mxu0
      %v371 = vadd.f32 0.0, %v370
      %v372 = vpop.f32.mrf.mxu0
      %373 = vmatprep.mubr.f32.mxu0 0.0
      %374 = vmatmul.mubr.f32.gmra.mxu0 %v233
      %v375 = vpop.f32.mrf.mxu0
      %v376 = vadd.f32 0.0, %v375
      %v377 = vpop.f32.mrf.mxu0
      %378 = vmatprep.mubr.f32.mxu0 0.0
      %379 = vmatmul.mubr.f32.gmra.mxu0 %v234
      %v380 = vpop.f32.mrf.mxu0
      %v381 = vadd.f32 0.0, %v380
      %v382 = vpop.f32.mrf.mxu0
      %383 = vmatprep.mubr.f32.mxu0 0.0
      %384 = vmatmul.mubr.f32.gmra.mxu0 %v235
      %v385 = vpop.f32.mrf.mxu0
      %v386 = vadd.f32 0.0, %v385
      %v387 = vpop.f32.mrf.mxu0
      %388 = vmatprep.mubr.f32.mxu0 0.0
      %389 = vmatmul.mubr.f32.gmra.mxu0 %v236
      %v390 = vpop.f32.mrf.mxu0
      %v391 = vadd.f32 0.0, %v390
      %v392 = vpop.f32.mrf.mxu0
      %393 = vmatprep.mubr.f32.mxu0 0.0
      %394 = vmatmul.mubr.f32.gmra.mxu0 %v237
      %v395 = vpop.f32.mrf.mxu0
      %v396 = vadd.f32 0.0, %v395
      %v397 = vpop.f32.mrf.mxu0
      %398 = vmatprep.mubr.f32.mxu0 0.0
      %399 = vmatmul.mubr.f32.gmra.mxu0 %v238
      %v400 = vpop.f32.mrf.mxu0
      %v401 = vadd.f32 0.0, %v400
      %v402 = vpop.f32.mrf.mxu0
      %403 = vmatprep.mubr.f32.mxu0 0.0
      %404 = vmatmul.mubr.f32.gmra.mxu0 %v239
      %v405 = vpop.f32.mrf.mxu0
      %v406 = vadd.f32 0.0, %v405
      %v407 = vpop.f32.mrf.mxu0
      %408 = vmatprep.mubr.f32.mxu0 0.0
      %409 = vmatmul.mubr.f32.gmra.mxu0 %v240
      %v410 = vpop.f32.mrf.mxu0
      %v411 = vadd.f32 0.0, %v410
      %v412 = vpop.f32.mrf.mxu0
      %413 = vmatprep.mubr.f32.mxu0 0.0
      %414 = vmatmul.mubr.f32.gmra.mxu0 %v241
      %v415 = vpop.f32.mrf.mxu0
      %v416 = vadd.f32 0.0, %v415
      %v417 = vpop.f32.mrf.mxu0
      %418 = vmatprep.mubr.f32.mxu0 0.0
      %419 = vmatmul.mubr.f32.gmra.mxu0 %v242
      %v420 = vpop.f32.mrf.mxu0
      %v421 = vadd.f32 0.0, %v420
      %v422 = vpop.f32.mrf.mxu0
      %423 = vmatprep.mubr.f32.mxu0 0.0
      %424 = vmatmul.mubr.f32.gmra.mxu0 %v243
      %v425 = vpop.f32.mrf.mxu0
      %v426 = vadd.f32 0.0, %v425
      %v427 = vpop.f32.mrf.mxu0
      %428 = vmatprep.mubr.f32.mxu0 0.0
      %429 = vmatmul.mubr.f32.gmra.mxu0 %v244
      %v430 = vpop.f32.mrf.mxu0
      %v431 = vadd.f32 0.0, %v430
      %v432 = vpop.f32.mrf.mxu0
      %433 = vmatprep.mubr.f32.mxu0 0.0
      %434 = vmatmul.mubr.f32.gmra.mxu0 %v245
      %v435 = vpop.f32.mrf.mxu0
      %v436 = vadd.f32 0.0, %v435
      %v437 = vpop.f32.mrf.mxu0
      %438 = vdwg.mxu0
      %439 = vmatprep.subr.mxu0 0.0
      %440 = vmatpush1.xpose.msra.mxu0 %v261
      %441 = vmatprep.subr.mxu0 0.0
      %442 = vmatpush1.xpose.msra.mxu0 %v260
      %443 = vmatprep.subr.mxu0 0.0
      %444 = vmatpush1.xpose.msra.mxu0 %v259
      %445 = vmatprep.subr.mxu0 0.0
      %446 = vmatpush1.xpose.msra.mxu0 %v258
      %447 = vmatprep.subr.mxu0 0.0
      %448 = vmatpush1.xpose.msra.mxu0 %v257
      %449 = vmatprep.subr.mxu0 0.0
      %450 = vmatpush1.xpose.msra.mxu0 %v256
      %451 = vmatprep.subr.mxu0 0.0
      %452 = vmatpush1.xpose.msra.mxu0 %v255
      %453 = vmatprep.subr.mxu0 0.0
      %454 = vmatpush1.xpose.msra.mxu0 %v254
      %455 = vmatprep.subr.mxu0 0.0
      %456 = vmatpush1.xpose.msra.mxu0 %v253
      %457 = vmatprep.subr.mxu0 0.0
      %458 = vmatpush1.xpose.msra.mxu0 %v252
      %459 = vmatprep.subr.mxu0 0.0
      %460 = vmatpush1.xpose.msra.mxu0 %v251
      %461 = vmatprep.subr.mxu0 0.0
      %462 = vmatpush1.xpose.msra.mxu0 %v250
      %463 = vmatprep.subr.mxu0 0.0
      %464 = vmatpush1.xpose.msra.mxu0 %v249
      %465 = vmatprep.subr.mxu0 0.0
      %466 = vmatpush1.xpose.msra.mxu0 %v248
      %467 = vmatprep.subr.mxu0 0.0
      %468 = vmatpush1.xpose.msra.mxu0 %v247
      %469 = vmatprep.subr.mxu0 0.0
      %470 = vmatpush1.xpose.msra.mxu0 %v246
      %471 = vmatprep.subr.mxu0 0.0
      %472 = vmatpush2.xpose.msra.mxu0 %v277
      %473 = vmatprep.subr.mxu0 0.0
      %474 = vmatpush2.xpose.msra.mxu0 %v276
      %475 = vmatprep.subr.mxu0 0.0
      %476 = vmatpush2.xpose.msra.mxu0 %v275
      %477 = vmatprep.subr.mxu0 0.0
      %478 = vmatpush2.xpose.msra.mxu0 %v274
      %479 = vmatprep.subr.mxu0 0.0
      %480 = vmatpush2.xpose.msra.mxu0 %v273
      %481 = vmatprep.subr.mxu0 0.0
      %482 = vmatpush2.xpose.msra.mxu0 %v272
      %483 = vmatprep.subr.mxu0 0.0
      %484 = vmatpush2.xpose.msra.mxu0 %v271
      %485 = vmatprep.subr.mxu0 0.0
      %486 = vmatpush2.xpose.msra.mxu0 %v270
      %487 = vmatprep.subr.mxu0 0.0
      %488 = vmatpush2.xpose.msra.mxu0 %v269
      %489 = vmatprep.subr.mxu0 0.0
      %490 = vmatpush2.xpose.msra.mxu0 %v268
      %491 = vmatprep.subr.mxu0 0.0
      %492 = vmatpush2.xpose.msra.mxu0 %v267
      %493 = vmatprep.subr.mxu0 0.0
      %494 = vmatpush2.xpose.msra.mxu0 %v266
      %495 = vmatprep.subr.mxu0 0.0
      %496 = vmatpush2.xpose.msra.mxu0 %v265
      %497 = vmatprep.subr.mxu0 0.0
      %498 = vmatpush2.xpose.msra.mxu0 %v264
      %499 = vmatprep.subr.mxu0 0.0
      %500 = vmatpush2.xpose.msra.mxu0 %v263
      %501 = vmatprep.subr.mxu0 0.0
      %502 = vmatpush2.xpose.msra.mxu0 %v262
      %503 = vmatprep.mubr.f32.mxu0 0.0
      %504 = vmatmul.mubr.f32.gmra.mxu0 %v361
      %v505 = vpop.f32.mrf.mxu0
      %v506 = vadd.f32 0.0, %v505
      %v507 = vpop.f32.mrf.mxu0
      %v508 = vadd.f32 0.0, %v507
      %509 = vmatprep.mubr.f32.mxu0 0.0
      %510 = vmatmul.mubr.f32.gmra.mxu0 %v366
      %v511 = vpop.f32.mrf.mxu0
      %v512 = vadd.f32 0.0, %v511
      %v513 = vpop.f32.mrf.mxu0
      %v514 = vadd.f32 0.0, %v513
      %515 = vmatprep.mubr.f32.mxu0 0.0
      %516 = vmatmul.mubr.f32.gmra.mxu0 %v371
      %v517 = vpop.f32.mrf.mxu0
      %v518 = vadd.f32 0.0, %v517
      %v519 = vpop.f32.mrf.mxu0
      %v520 = vadd.f32 0.0, %v519
      %521 = vmatprep.mubr.f32.mxu0 0.0
      %522 = vmatmul.mubr.f32.gmra.mxu0 %v376
      %v523 = vpop.f32.mrf.mxu0
      %v524 = vadd.f32 0.0, %v523
      %v525 = vpop.f32.mrf.mxu0
      %v526 = vadd.f32 0.0, %v525
      %527 = vmatprep.mubr.f32.mxu0 0.0
      %528 = vmatmul.mubr.f32.gmra.mxu0 %v381
      %v529 = vpop.f32.mrf.mxu0
      %v530 = vadd.f32 0.0, %v529
      %v531 = vpop.f32.mrf.mxu0
      %v532 = vadd.f32 0.0, %v531
      %533 = vmatprep.mubr.f32.mxu0 0.0
      %534 = vmatmul.mubr.f32.gmra.mxu0 %v386
      %v535 = vpop.f32.mrf.mxu0
      %v536 = vadd.f32 0.0, %v535
      %v537 = vpop.f32.mrf.mxu0
      %v538 = vadd.f32 0.0, %v537
      %539 = vmatprep.mubr.f32.mxu0 0.0
      %540 = vmatmul.mubr.f32.gmra.mxu0 %v391
      %v541 = vpop.f32.mrf.mxu0
      %v542 = vadd.f32 0.0, %v541
      %v543 = vpop.f32.mrf.mxu0
      %v544 = vadd.f32 0.0, %v543
      %545 = vmatprep.mubr.f32.mxu0 0.0
      %546 = vmatmul.mubr.f32.gmra.mxu0 %v396
      %v547 = vpop.f32.mrf.mxu0
      %v548 = vadd.f32 0.0, %v547
      %v549 = vpop.f32.mrf.mxu0
      %v550 = vadd.f32 0.0, %v549
      %551 = vmatprep.mubr.f32.mxu0 0.0
      %552 = vmatmul.mubr.f32.gmra.mxu0 %v401
      %v553 = vpop.f32.mrf.mxu0
      %v554 = vadd.f32 0.0, %v553
      %v555 = vpop.f32.mrf.mxu0
      %v556 = vadd.f32 0.0, %v555
      %557 = vmatprep.mubr.f32.mxu0 0.0
      %558 = vmatmul.mubr.f32.gmra.mxu0 %v406
      %v559 = vpop.f32.mrf.mxu0
      %v560 = vadd.f32 0.0, %v559
      %v561 = vpop.f32.mrf.mxu0
      %v562 = vadd.f32 0.0, %v561
      %563 = vmatprep.mubr.f32.mxu0 0.0
      %564 = vmatmul.mubr.f32.gmra.mxu0 %v411
      %v565 = vpop.f32.mrf.mxu0
      %v566 = vadd.f32 0.0, %v565
      %v567 = vpop.f32.mrf.mxu0
      %v568 = vadd.f32 0.0, %v567
      %569 = vmatprep.mubr.f32.mxu0 0.0
      %570 = vmatmul.mubr.f32.gmra.mxu0 %v416
      %v571 = vpop.f32.mrf.mxu0
      %v572 = vadd.f32 0.0, %v571
      %v573 = vpop.f32.mrf.mxu0
      %v574 = vadd.f32 0.0, %v573
      %575 = vmatprep.mubr.f32.mxu0 0.0
      %576 = vmatmul.mubr.f32.gmra.mxu0 %v421
      %v577 = vpop.f32.mrf.mxu0
      %v578 = vadd.f32 0.0, %v577
      %v579 = vpop.f32.mrf.mxu0
      %v580 = vadd.f32 0.0, %v579
      %581 = vmatprep.mubr.f32.mxu0 0.0
      %582 = vmatmul.mubr.f32.gmra.mxu0 %v426
      %v583 = vpop.f32.mrf.mxu0
      %v584 = vadd.f32 0.0, %v583
      %v585 = vpop.f32.mrf.mxu0
      %v586 = vadd.f32 0.0, %v585
      %587 = vmatprep.mubr.f32.mxu0 0.0
      %588 = vmatmul.mubr.f32.gmra.mxu0 %v431
      %v589 = vpop.f32.mrf.mxu0
      %v590 = vadd.f32 0.0, %v589
      %v591 = vpop.f32.mrf.mxu0
      %v592 = vadd.f32 0.0, %v591
      %593 = vmatprep.mubr.f32.mxu0 0.0
      %594 = vmatmul.mubr.f32.gmra.mxu0 %v436
      %v595 = vpop.f32.mrf.mxu0
      %v596 = vadd.f32 0.0, %v595
      %v597 = vpop.f32.mrf.mxu0
      %v598 = vadd.f32 0.0, %v597
      %599 = vdwg.mxu0
      %v600 = vmax.f32 %v506, 0.0
      %v601 = vmax.f32 %v508, 0.0
      %v602 = vmax.f32 %v512, 0.0
      %v603 = vmax.f32 %v514, 0.0
      %v604 = vmax.f32 %v518, 0.0
      %v605 = vmax.f32 %v520, 0.0
      %v606 = vmax.f32 %v524, 0.0
      %v607 = vmax.f32 %v526, 0.0
      %v608 = vmax.f32 %v530, 0.0
      %v609 = vmax.f32 %v532, 0.0
      %v610 = vmax.f32 %v536, 0.0
      %v611 = vmax.f32 %v538, 0.0
      %v612 = vmax.f32 %v542, 0.0
      %v613 = vmax.f32 %v544, 0.0
      %v614 = vmax.f32 %v548, 0.0
      %v615 = vmax.f32 %v550, 0.0
      %v616 = vmax.f32 %v554, 0.0
      %v617 = vmax.f32 %v556, 0.0
      %v618 = vmax.f32 %v560, 0.0
      %v619 = vmax.f32 %v562, 0.0
      %v620 = vmax.f32 %v566, 0.0
      %v621 = vmax.f32 %v568, 0.0
      %v622 = vmax.f32 %v572, 0.0
      %v623 = vmax.f32 %v574, 0.0
      %v624 = vmax.f32 %v578, 0.0
      %v625 = vmax.f32 %v580, 0.0
      %v626 = vmax.f32 %v584, 0.0
      %v627 = vmax.f32 %v586, 0.0
      %v628 = vmax.f32 %v590, 0.0
      %v629 = vmax.f32 %v592, 0.0
      %v630 = vmax.f32 %v596, 0.0
      %v631 = vmax.f32 %v598, 0.0
      %v632 = vld [vmem:[%s3] sm:$0x3]
      %v634 = vlaneseq
      %v635 = vshrl.u32 %v634, 7
      %v636 = vsub.s32 0, %v635
      %v637 = vrot.slane %v632, %v636
      %v638 = vlaneseq
      %v639 = vshrl.u32 %v638, 7
      %v640 = vsub.s32 1, %v639
      %v641 = vrot.slane %v632, %v640
      %v644 = vmul.f32 %v600, %v637
      %v645 = vmul.f32 %v601, %v641
      %v646 = vmul.f32 %v602, %v637
      %v647 = vmul.f32 %v603, %v641
      %v648 = vmul.f32 %v604, %v637
      %v649 = vmul.f32 %v605, %v641
      %v650 = vmul.f32 %v606, %v637
      %v651 = vmul.f32 %v607, %v641
      %v652 = vmul.f32 %v608, %v637
      %v653 = vmul.f32 %v609, %v641
      %v654 = vmul.f32 %v610, %v637
      %v655 = vmul.f32 %v611, %v641
      %v656 = vmul.f32 %v612, %v637
      %v657 = vmul.f32 %v613, %v641
      %v658 = vmul.f32 %v614, %v637
      %v659 = vmul.f32 %v615, %v641
      %v660 = vmul.f32 %v616, %v637
      %v661 = vmul.f32 %v617, %v641
      %v662 = vmul.f32 %v618, %v637
      %v663 = vmul.f32 %v619, %v641
      %v664 = vmul.f32 %v620, %v637
      %v665 = vmul.f32 %v621, %v641
      %v666 = vmul.f32 %v622, %v637
      %v667 = vmul.f32 %v623, %v641
      %v668 = vmul.f32 %v624, %v637
      %v669 = vmul.f32 %v625, %v641
      %v670 = vmul.f32 %v626, %v637
      %v671 = vmul.f32 %v627, %v641
      %v672 = vmul.f32 %v628, %v637
      %v673 = vmul.f32 %v629, %v641
      %v674 = vmul.f32 %v630, %v637
      %v675 = vmul.f32 %v631, %v641
      %v676 = vadd.f32 %v644, %v645
      %677 = vadd.xlane.f32.xlu0 %v676
      %v678 = vpop.xlane.xlu0 %677
      %v679 = vadd.f32 %v646, %v647
      %680 = vadd.xlane.f32.xlu0 %v679
      %v681 = vpop.xlane.xlu0 %680
      %v682 = vadd.f32 %v648, %v649
      %683 = vadd.xlane.f32.xlu0 %v682
      %v684 = vpop.xlane.xlu0 %683
      %v685 = vadd.f32 %v650, %v651
      %686 = vadd.xlane.f32.xlu0 %v685
      %v687 = vpop.xlane.xlu0 %686
      %v688 = vadd.f32 %v652, %v653
      %689 = vadd.xlane.f32.xlu0 %v688
      %v690 = vpop.xlane.xlu0 %689
      %v691 = vadd.f32 %v654, %v655
      %692 = vadd.xlane.f32.xlu0 %v691
      %v693 = vpop.xlane.xlu0 %692
      %v694 = vadd.f32 %v656, %v657
      %695 = vadd.xlane.f32.xlu0 %v694
      %v696 = vpop.xlane.xlu0 %695
      %v697 = vadd.f32 %v658, %v659
      %698 = vadd.xlane.f32.xlu0 %v697
      %v699 = vpop.xlane.xlu0 %698
      %v700 = vadd.f32 %v660, %v661
      %701 = vadd.xlane.f32.xlu0 %v700
      %v702 = vpop.xlane.xlu0 %701
      %v703 = vadd.f32 %v662, %v663
      %704 = vadd.xlane.f32.xlu0 %v703
      %v705 = vpop.xlane.xlu0 %704
      %v706 = vadd.f32 %v664, %v665
      %707 = vadd.xlane.f32.xlu0 %v706
      %v708 = vpop.xlane.xlu0 %707
      %v709 = vadd.f32 %v666, %v667
      %710 = vadd.xlane.f32.xlu0 %v709
      %v711 = vpop.xlane.xlu0 %710
      %v712 = vadd.f32 %v668, %v669
      %713 = vadd.xlane.f32.xlu0 %v712
      %v714 = vpop.xlane.xlu0 %713
      %v715 = vadd.f32 %v670, %v671
      %716 = vadd.xlane.f32.xlu0 %v715
      %v717 = vpop.xlane.xlu0 %716
      %v718 = vadd.f32 %v672, %v673
      %719 = vadd.xlane.f32.xlu0 %v718
      %v720 = vpop.xlane.xlu0 %719
      %v721 = vadd.f32 %v674, %v675
      %722 = vadd.xlane.f32.xlu0 %v721
      %v723 = vpop.xlane.xlu0 %722
      %v724 = vld [vmem:[#allocation2] sm:$0x1]
      %v726 = vlaneseq
      %v727 = vshrl.u32 %v726, 7
      %v728 = vsub.s32 0, %v727
      %v729 = vrot.slane %v724, %v728
      %v731 = vadd.f32 %v678, %v729
      %v732 = vadd.f32 %v681, %v729
      %v733 = vadd.f32 %v684, %v729
      %v734 = vadd.f32 %v687, %v729
      %v735 = vadd.f32 %v690, %v729
      %v736 = vadd.f32 %v693, %v729
      %v737 = vadd.f32 %v696, %v729
      %v738 = vadd.f32 %v699, %v729
      %v739 = vadd.f32 %v702, %v729
      %v740 = vadd.f32 %v705, %v729
      %v741 = vadd.f32 %v708, %v729
      %v742 = vadd.f32 %v711, %v729
      %v743 = vadd.f32 %v714, %v729
      %v744 = vadd.f32 %v717, %v729
      %v745 = vadd.f32 %v720, %v729
      %v746 = vadd.f32 %v723, %v729
      %vm747 = vcmask 7168
      %748 = vst.msk [vmem:[%s228] sm:$0xff] %vm747, %v731
      %749 = vst.msk [vmem:[%s228 + $0x8] sm:$0xff] %vm747, %v732
      %750 = vst.msk [vmem:[%s228 + $0x10] sm:$0xff] %vm747, %v733
      %751 = vst.msk [vmem:[%s228 + $0x18] sm:$0xff] %vm747, %v734
      %752 = vst.msk [vmem:[%s228 + $0x20] sm:$0xff] %vm747, %v735
      %753 = vst.msk [vmem:[%s228 + $0x28] sm:$0xff] %vm747, %v736
      %754 = vst.msk [vmem:[%s228 + $0x30] sm:$0xff] %vm747, %v737
      %755 = vst.msk [vmem:[%s228 + $0x38] sm:$0xff] %vm747, %v738
      %756 = vst.msk [vmem:[%s228 + $0x40] sm:$0xff] %vm747, %v739
      %757 = vst.msk [vmem:[%s228 + $0x48] sm:$0xff] %vm747, %v740
      %758 = vst.msk [vmem:[%s228 + $0x50] sm:$0xff] %vm747, %v741
      %759 = vst.msk [vmem:[%s228 + $0x58] sm:$0xff] %vm747, %v742
      %760 = vst.msk [vmem:[%s228 + $0x60] sm:$0xff] %vm747, %v743
      %761 = vst.msk [vmem:[%s228 + $0x68] sm:$0xff] %vm747, %v744
      %762 = vst.msk [vmem:[%s228 + $0x70] sm:$0xff] %vm747, %v745
      %763 = vst.msk [vmem:[%s228 + $0x78] sm:$0xff] %vm747, %v746
      %s764 = smul.u32 16, %s18
      %p765 = scmp.lt.s32.totalorder %s764, 31
      %s766 = scalar_select %p765, %s764, 31
      %s767 = smul.addr %s766, 8
      %s768 = scalar_lea.vmem %s5, %s767
      // Predicated region
      $region41: #{bilinear_decoder.3} parent=39 // pred_check
        %p769 = pneg %p146
      $region42: #{bilinear_decoder.3} parent=39 // pred_check_branch
        %771 = sbr.rel (%p769) target = $region44
      $region43: #{bilinear_decoder.3} parent=39 // pred_region
        %s772 = smul.u32 16, %s18
      $region44: #{bilinear_decoder.3} parent=39 // pred_fallthru
        _
    $region40: #{bilinear_decoder.3} parent=5 // pred_fallthru
      _
    %p773 = scmp.le.s32.totalorder 2, %s13
    // Predicated region
    $region45: #{bilinear_decoder.3} parent=5 // pred_check
      %p774 = pneg %p773
    $region46: #{bilinear_decoder.3} parent=5 // pred_check_branch
      %776 = sbr.rel (%p774) target = $region48
    $region47: #{bilinear_decoder.3} parent=5 // pred_region
      %s777 = ssub.s32 %s13, 2
      // Predicated region
      $region49: #{bilinear_decoder.3} parent=47 // pred_check
        %p778 = pneg %p152
      $region50: #{bilinear_decoder.3} parent=47 // pred_check_branch
        %780 = sbr.rel (%p778) target = $region52
      $region51: #{bilinear_decoder.3} parent=47 // pred_region
        %s781 = smul.u32 16, %s19
        %p782 = scmp.lt.s32.totalorder %s781, 31
        %s783 = scalar_select %p782, %s781, 31
        %s784 = smul.addr %s783, 8
        %s785 = scalar_lea.vmem %s5, %s784
      $region52: #{bilinear_decoder.3} parent=47 // pred_fallthru
        _
    $region48: #{bilinear_decoder.3} parent=5 // pred_fallthru
      _
  $region6: #{bilinear_decoder.3} parent=0 // loop_footer
    %s17 = sadd.s32 1, %s13
  $region7: #{bilinear_decoder.3} parent=0 // loop_footer_branch
    %12 = sbr.rel target = $region3
  $region8: #{bilinear_decoder.3} parent=0 // loop_exit
    _

</llo_original>
